<compile_context>
chip_gen: v7x
topology: tpu7x:2x2x1
jax: 0.10.0
libtpu: 0.0.40
codegen_flags: <defaults>
</compile_context>

<pallas_src>
import functools

import jax
import jax.numpy as jnp
from jax import lax
from jax.experimental import pallas as pl
from jax.experimental.pallas import tpu as pltpu


def _round_up(x, m):
    return ((x + m - 1) // m) * m


def _bilateral_kernel(params_ref, xt_ref, xc_ref, xb_ref, out_ref, wp_ref, *,
                      C, dyn, H, W, TH, K, dil, halo_bh, lpad):
    """One (batch, H-tile) block per grid step.

    params_ref: (C+2,)              SMEM   per-channel + spatial bandwidths (<= 0)
    xt_ref    : (1, C, halo_bh, W)  VMEM   halo rows just above the tile (clamped)
    xc_ref    : (1, C, TH, W)       VMEM   the tile itself
    xb_ref    : (1, C, halo_bh, W)  VMEM   halo rows just below the tile (clamped)
    out_ref   : (1, dyn, TH, W)     VMEM
    wp_ref    : (C, 2*halo_bh+TH, W+2*lpad) VMEM scratch (padded working slab)
    """
    pad = (K // 2) * dil
    half = K // 2
    t = pl.program_id(1)

    # ---- load input blocks, widening to f32 (f32 accumulation everywhere) ----
    xc = xc_ref[0].astype(jnp.float32)        # (C, TH, W)
    xt = xt_ref[0].astype(jnp.float32)        # (C, halo_bh, W)
    xb = xb_ref[0].astype(jnp.float32)        # (C, halo_bh, W)

    # ---- assemble the working slab in VMEM scratch (all stores aligned) ----
    # rows : [halo_bh rows above | TH centre rows | halo_bh rows below]
    # cols : data at [lpad, lpad+W); zero guard bands on both sides so masked
    #        taps never read uninitialised (possibly NaN) VMEM.
    wp_ref[...] = jnp.zeros_like(wp_ref)
    wp_ref[:, 0:halo_bh, lpad:lpad + W] = xt
    wp_ref[:, halo_bh:halo_bh + TH, lpad:lpad + W] = xc
    wp_ref[:, halo_bh + TH:2 * halo_bh + TH, lpad:lpad + W] = xb

    # ---- per-channel bandwidths from SMEM scalars (all <= 0) ----
    p = [params_ref[c] for c in range(C)]
    p_y = params_ref[C]
    p_x = params_ref[C + 1]

    # ---- analytic boundary masks on the (TH, W) output tile ----
    row_g = t * TH + lax.broadcasted_iota(jnp.int32, (TH, W), 0)   # global row
    col_g = lax.broadcasted_iota(jnp.int32, (TH, W), 1)            # global col

    # centre tap: weight is exactly 1 (zero diff, zero spatial term, always valid)
    den = jnp.ones((TH, W), jnp.float32)
    num = xc[:dyn]

    for j in range(K):                        # statically unrolled K*K - 1 taps
        dx = (j - half) * dil
        if dx < 0:
            col_ok = col_g >= -dx
        elif dx > 0:
            col_ok = col_g < W - dx
        else:
            col_ok = None
        sx = p_x * float(dx * dx)             # scalar, hoisted out of the i loop
        x0 = lpad + dx
        for i in range(K):
            dy = (i - half) * dil
            if dy == 0 and dx == 0:
                continue                      # centre tap already accumulated
            if dy < 0:
                row_ok = row_g >= -dy
            elif dy > 0:
                row_ok = row_g < H - dy
            else:
                row_ok = None
            valid = (col_ok if row_ok is None else
                     row_ok if col_ok is None else row_ok & col_ok)

            y0 = halo_bh + dy
            f_q = wp_ref[:, y0:y0 + TH, x0:x0 + W]       # (C, TH, W) shifted tap

            d0 = f_q[0] - xc[0]
            logit = p[0] * (d0 * d0)
            for c in range(1, C):
                dc = f_q[c] - xc[c]
                logit = logit + p[c] * (dc * dc)
            logit = logit + (sx + p_y * float(dy * dy))  # scalar spatial term

            w = jnp.where(valid, jnp.exp(logit), 0.0)    # zero weight off-image
            den = den + w
            num = num + w[None, :, :] * f_q[:dyn]        # only the output channels

    # one reciprocal + dyn multiplies (approx=True possible if tolerance allows)
    inv_den = pl.reciprocal(den, approx=False)
    out_ref[0] = (num * inv_den[None, :, :]).astype(out_ref.dtype)


def _choose_tile_h(H, W, C, halo_bh):
    """Largest H-tile that divides H, is a multiple of the halo block height,
    keeps the f32 input block under ~512 KiB (safe for v7x's smaller VMEM) and
    leaves >= 2 grid steps along H when possible (pipeline depth / megacore)."""
    row_cap = max(halo_bh, (512 * 1024) // (4 * C * max(W, 1)))
    if H >= 2 * halo_bh:
        row_cap = min(row_cap, H // 2)
    th = halo_bh
    for cand in range(halo_bh, H + 1, halo_bh):
        if H % cand == 0 and cand <= row_cap:
            th = cand
    return th


def semi_fixed_bilateral_filter(x, params, dynamic_size, kernel_size, dilation=1):
    """Pallas TPU implementation of SemiFixedBilateralFilter.forward."""
    N, C, H, W = x.shape
    Cp = C + 2
    params = jnp.asarray(params, jnp.float32).reshape(Cp)
    if not (1 <= dynamic_size <= C):
        raise ValueError(f"dynamic_size={dynamic_size} must be in [1, {C}]")
    if kernel_size < 1 or dilation < 1:
        raise ValueError("kernel_size and dilation must be >= 1")
    if kernel_size == 1:
        return x[:, :dynamic_size]            # window is just the centre pixel

    pad = (kernel_size // 2) * dilation
    halo_bh = _round_up(max(pad, 1), 8)       # sublane-aligned halo block height
    if H % halo_bh != 0:
        raise ValueError(
            f"H={H} must be a multiple of {halo_bh} (halo block height for "
            f"kernel_size={kernel_size}, dilation={dilation})")

    TH = _choose_tile_h(H, W, C, halo_bh)
    nH = H // TH
    r = TH // halo_bh
    nhb = H // halo_bh
    lpad = _round_up(pad, 128)                # lane-aligned guard band in scratch
    wp_rows = 2 * halo_bh + TH
    wp_w = W + 2 * lpad

    # VMEM budget: double-buffered I/O blocks + scratch slab + temporaries,
    # capped at 64 MiB so the tiling also fits v7x's halved VMEM.
    itemsize = jnp.dtype(x.dtype).itemsize
    lane_w = _round_up(W, 128)
    blk_in = itemsize * C * (TH + 2 * halo_bh) * lane_w
    blk_out = itemsize * dynamic_size * TH * lane_w
    scratch_b = 4 * C * _round_up(wp_rows, 8) * _round_up(wp_w, 128)
    tmp_b = 4 * (2 * C + dynamic_size + 8) * _round_up(TH, 8) * lane_w
    vmem_limit = int(min(max(2 * (blk_in + blk_out) + scratch_b + tmp_b + (4 << 20),
                             16 << 20), 64 << 20))

    def top_map(b, t):     # halo block just above the tile (clamped at the top)
        return (b, 0, jnp.maximum(t * r - 1, 0), 0)

    def cur_map(b, t):
        return (b, 0, t, 0)

    def bot_map(b, t):     # halo block just below the tile (clamped at the bottom)
        return (b, 0, jnp.minimum((t + 1) * r, nhb - 1), 0)

    def out_map(b, t):
        return (b, 0, t, 0)

    kernel = functools.partial(
        _bilateral_kernel, C=C, dyn=dynamic_size, H=H, W=W, TH=TH,
        K=kernel_size, dil=dilation, halo_bh=halo_bh, lpad=lpad)

    return pl.pallas_call(
        kernel,
        out_shape=jax.ShapeDtypeStruct((N, dynamic_size, H, W), x.dtype),
        grid=(N, nH),
        in_specs=[
            pl.BlockSpec(memory_space=pltpu.MemorySpace.SMEM),        # params
            pl.BlockSpec((1, C, halo_bh, W), top_map),
            pl.BlockSpec((1, C, TH, W), cur_map),
            pl.BlockSpec((1, C, halo_bh, W), bot_map),
        ],
        out_specs=pl.BlockSpec((1, dynamic_size, TH, W), out_map),
        scratch_shapes=[pltpu.VMEM((C, wp_rows, wp_w), jnp.float32)],
        compiler_params=pltpu.CompilerParams(
            dimension_semantics=("parallel", "parallel"),
            vmem_limit_bytes=vmem_limit),
    )(params, x, x, x)


def _reference(x, params, dynamic_size, kernel_size, dilation):
    """Pure-JAX reference with identical semantics (for validation)."""
    N, C, H, W = x.shape
    xf = x.astype(jnp.float32)
    p = params.astype(jnp.float32)
    p_ch = p[:C].reshape(1, C, 1, 1)
    p_y = p[C]
    p_x = p[C + 1]
    pad = (kernel_size // 2) * dilation
    xpad = jnp.pad(xf, ((0, 0), (0, 0), (pad, pad), (pad, pad)))
    mask = jnp.pad(jnp.ones((H, W), jnp.float32), ((pad, pad), (pad, pad)))
    num = jnp.zeros((N, C, H, W), jnp.float32)
    den = jnp.zeros((N, H, W), jnp.float32)
    half = kernel_size // 2
    for i in range(kernel_size):
        for j in range(kernel_size):
            dy = (i - half) * dilation
            dx = (j - half) * dilation
            y0, x0 = i * dilation, j * dilation
            fq = xpad[:, :, y0:y0 + H, x0:x0 + W]
            mq = mask[y0:y0 + H, x0:x0 + W]
            diff = fq - xf
            logit = (jnp.sum(p_ch * diff * diff, axis=1)
                     + p_y * float(dy * dy) + p_x * float(dx * dx))
            w = jnp.exp(logit) * mq
            den = den + w
            num = num + w[:, None] * fq
    out = num / den[:, None]
    return out[:, :dynamic_size].astype(x.dtype)


if __name__ == "__main__":
    # SemiFixedBilateralFilter(total_dim=4, dynamic_size=3, kernel_size=3, dialation=1)
    total_dim = 4
    dynamic_size = 3
    kernel_size = 3
    dilation = 1

    # Small NCHW input; W = 128 keeps the lane axis dense (unmasked stores).
    N, H, W = 2, 16, 128

    key = jax.random.PRNGKey(0)
    k_x, k_p = jax.random.split(key)
    x = jax.random.normal(k_x, (N, total_dim, H, W), dtype=jnp.float32)
    # matches the module init: randn(total_dim + 2).abs_().mul_(-0.01); clamp_(max=0)
    params = -0.01 * jnp.abs(
        jax.random.normal(k_p, (total_dim + 2,), dtype=jnp.float32))

    out = semi_fixed_bilateral_filter(x, params, dynamic_size, kernel_size, dilation)
    out = jax.block_until_ready(out)
    assert out.shape == (N, dynamic_size, H, W), out.shape

    ref = _reference(x, params, dynamic_size, kernel_size, dilation)
    err = float(jnp.max(jnp.abs(out - ref)))
    assert jnp.allclose(out, ref, rtol=1e-4, atol=1e-4), f"max abs err {err}"
    print("KERNEL_OK")
</pallas_src>

<mosaic_0001>
module attributes {stable_mosaic.version = 11 : i64} {
  func.func @_bilateral_kernel(%arg0: i32, %arg1: i32, %arg2: memref<6xf32, #tpu.memory_space<smem>>, %arg3: memref<1x4x8x128xf32, #tpu.memory_space<vmem>>, %arg4: memref<1x4x8x128xf32, #tpu.memory_space<vmem>>, %arg5: memref<1x4x8x128xf32, #tpu.memory_space<vmem>>, %arg6: memref<1x3x8x128xf32, #tpu.memory_space<vmem>>, %arg7: memref<4x24x384xf32, #tpu.memory_space<vmem>>) attributes {dimension_semantics = [#tpu.dimension_semantics<parallel>, #tpu.dimension_semantics<parallel>], iteration_bounds = array<i64: 2, 2>, scalar_prefetch = 0 : i64, scratch_operands = 1 : i64, tpu.core_type = #tpu.core_type<tc>, window_params = [{transform_indices = @transform_0, window_bounds = array<i64: 6>}, {transform_indices = @transform_1, window_bounds = array<i64: 1, 4, 8, 128>}, {transform_indices = @transform_2, window_bounds = array<i64: 1, 4, 8, 128>}, {transform_indices = @transform_3, window_bounds = array<i64: 1, 4, 8, 128>}, {transform_indices = @transform_4, window_bounds = array<i64: 1, 3, 8, 128>}]} {
    %c0 = arith.constant 0 : index
    %c0_0 = arith.constant 0 : index
    %c0_1 = arith.constant 0 : index
    %c0_2 = arith.constant 0 : index
    %0 = vector.load %arg4[%c0, %c0_0, %c0_1, %c0_2] : memref<1x4x8x128xf32, #tpu.memory_space<vmem>>, vector<1x4x8x128xf32>
    %1 = vector.shape_cast %0 : vector<1x4x8x128xf32> to vector<4x8x128xf32>
    %c0_3 = arith.constant 0 : index
    %c0_4 = arith.constant 0 : index
    %c0_5 = arith.constant 0 : index
    %c0_6 = arith.constant 0 : index
    %2 = vector.load %arg3[%c0_3, %c0_4, %c0_5, %c0_6] : memref<1x4x8x128xf32, #tpu.memory_space<vmem>>, vector<1x4x8x128xf32>
    %3 = vector.shape_cast %2 : vector<1x4x8x128xf32> to vector<4x8x128xf32>
    %c0_7 = arith.constant 0 : index
    %c0_8 = arith.constant 0 : index
    %c0_9 = arith.constant 0 : index
    %c0_10 = arith.constant 0 : index
    %4 = vector.load %arg5[%c0_7, %c0_8, %c0_9, %c0_10] : memref<1x4x8x128xf32, #tpu.memory_space<vmem>>, vector<1x4x8x128xf32>
    %5 = vector.shape_cast %4 : vector<1x4x8x128xf32> to vector<4x8x128xf32>
    %cst = arith.constant 0.000000e+00 : f32
    %6 = vector.broadcast %cst : f32 to vector<4x24x384xf32>
    %c0_11 = arith.constant 0 : index
    %c0_12 = arith.constant 0 : index
    %c0_13 = arith.constant 0 : index
    %7 = vector.load %arg7[%c0_11, %c0_12, %c0_13] : memref<4x24x384xf32, #tpu.memory_space<vmem>>, vector<4x24x384xf32>
    tpu.vector_store %arg7[%c0_11, %c0_12, %c0_13], %6 {strides = array<i32>} : memref<4x24x384xf32, #tpu.memory_space<vmem>>, vector<4x24x384xf32>,
    %c0_14 = arith.constant 0 : index
    %c0_15 = arith.constant 0 : index
    %c128 = arith.constant 128 : index
    %8 = vector.load %arg7[%c0_14, %c0_15, %c128] : memref<4x24x384xf32, #tpu.memory_space<vmem>>, vector<4x8x128xf32>
    tpu.vector_store %arg7[%c0_14, %c0_15, %c128], %3 {strides = array<i32>} : memref<4x24x384xf32, #tpu.memory_space<vmem>>, vector<4x8x128xf32>,
    %c0_16 = arith.constant 0 : index
    %c8 = arith.constant 8 : index
    %c128_17 = arith.constant 128 : index
    %9 = vector.load %arg7[%c0_16, %c8, %c128_17] : memref<4x24x384xf32, #tpu.memory_space<vmem>>, vector<4x8x128xf32>
    tpu.vector_store %arg7[%c0_16, %c8, %c128_17], %1 {strides = array<i32>} : memref<4x24x384xf32, #tpu.memory_space<vmem>>, vector<4x8x128xf32>,
    %c0_18 = arith.constant 0 : index
    %c16 = arith.constant 16 : index
    %c128_19 = arith.constant 128 : index
    %10 = vector.load %arg7[%c0_18, %c16, %c128_19] : memref<4x24x384xf32, #tpu.memory_space<vmem>>, vector<4x8x128xf32>
    tpu.vector_store %arg7[%c0_18, %c16, %c128_19], %5 {strides = array<i32>} : memref<4x24x384xf32, #tpu.memory_space<vmem>>, vector<4x8x128xf32>,
    %c0_20 = arith.constant 0 : index
    %11 = memref.load %arg2[%c0_20] : memref<6xf32, #tpu.memory_space<smem>>
    %c1 = arith.constant 1 : index
    %12 = memref.load %arg2[%c1] : memref<6xf32, #tpu.memory_space<smem>>
    %c2 = arith.constant 2 : index
    %13 = memref.load %arg2[%c2] : memref<6xf32, #tpu.memory_space<smem>>
    %c3 = arith.constant 3 : index
    %14 = memref.load %arg2[%c3] : memref<6xf32, #tpu.memory_space<smem>>
    %c4 = arith.constant 4 : index
    %15 = memref.load %arg2[%c4] : memref<6xf32, #tpu.memory_space<smem>>
    %c5 = arith.constant 5 : index
    %16 = memref.load %arg2[%c5] : memref<6xf32, #tpu.memory_space<smem>>
    %c8_i32 = arith.constant 8 : i32
    %17 = arith.muli %arg1, %c8_i32 : i32
    %18 = tpu.iota {dimensions = array<i32: 0>} : vector<8x128xi32>
    %19 = vector.broadcast %17 : i32 to vector<8x128xi32>
    %20 = arith.addi %19, %18 : vector<8x128xi32>
    %21 = tpu.iota {dimensions = array<i32: 1>} : vector<8x128xi32>
    %cst_21 = arith.constant 1.000000e+00 : f32
    %22 = vector.broadcast %cst_21 : f32 to vector<8x128xf32>
    %23 = vector.extract_strided_slice %1 {offsets = [0, 0, 0], sizes = [3, 8, 128], strides = [1, 1, 1]} : vector<4x8x128xf32> to vector<3x8x128xf32>
    %c1_i32 = arith.constant 1 : i32
    %24 = vector.broadcast %c1_i32 : i32 to vector<8x128xi32>
    %25 = arith.cmpi sge, %21, %24 : vector<8x128xi32>
    %cst_22 = arith.constant 1.000000e+00 : f32
    %26 = arith.mulf %16, %cst_22 : f32
    %c1_i32_23 = arith.constant 1 : i32
    %27 = vector.broadcast %c1_i32_23 : i32 to vector<8x128xi32>
    %28 = arith.cmpi sge, %20, %27 : vector<8x128xi32>
    %29 = arith.andi %28, %25 : vector<8x128xi1>
    %c0_24 = arith.constant 0 : index
    %c7 = arith.constant 7 : index
    %c127 = arith.constant 127 : index
    %30 = vector.load %arg7[%c0_24, %c7, %c127] : memref<4x24x384xf32, #tpu.memory_space<vmem>>, vector<4x8x128xf32>
    %31 = vector.extract_strided_slice %30 {offsets = [0, 0, 0], sizes = [1, 8, 128], strides = [1, 1, 1]} : vector<4x8x128xf32> to vector<1x8x128xf32>
    %32 = vector.shape_cast %31 : vector<1x8x128xf32> to vector<8x128xf32>
    %33 = vector.extract_strided_slice %1 {offsets = [0, 0, 0], sizes = [1, 8, 128], strides = [1, 1, 1]} : vector<4x8x128xf32> to vector<1x8x128xf32>
    %34 = vector.shape_cast %33 : vector<1x8x128xf32> to vector<8x128xf32>
    %35 = arith.subf %32, %34 : vector<8x128xf32>
    %36 = arith.mulf %35, %35 : vector<8x128xf32>
    %37 = vector.broadcast %11 : f32 to vector<8x128xf32>
    %38 = arith.mulf %37, %36 : vector<8x128xf32>
    %39 = vector.extract_strided_slice %30 {offsets = [1, 0, 0], sizes = [1, 8, 128], strides = [1, 1, 1]} : vector<4x8x128xf32> to vector<1x8x128xf32>
    %40 = vector.shape_cast %39 : vector<1x8x128xf32> to vector<8x128xf32>
    %41 = vector.extract_strided_slice %1 {offsets = [1, 0, 0], sizes = [1, 8, 128], strides = [1, 1, 1]} : vector<4x8x128xf32> to vector<1x8x128xf32>
    %42 = vector.shape_cast %41 : vector<1x8x128xf32> to vector<8x128xf32>
    %43 = arith.subf %40, %42 : vector<8x128xf32>
    %44 = arith.mulf %43, %43 : vector<8x128xf32>
    %45 = vector.broadcast %12 : f32 to vector<8x128xf32>
    %46 = arith.mulf %45, %44 : vector<8x128xf32>
    %47 = arith.addf %38, %46 : vector<8x128xf32>
    %48 = vector.extract_strided_slice %30 {offsets = [2, 0, 0], sizes = [1, 8, 128], strides = [1, 1, 1]} : vector<4x8x128xf32> to vector<1x8x128xf32>
    %49 = vector.shape_cast %48 : vector<1x8x128xf32> to vector<8x128xf32>
    %50 = vector.extract_strided_slice %1 {offsets = [2, 0, 0], sizes = [1, 8, 128], strides = [1, 1, 1]} : vector<4x8x128xf32> to vector<1x8x128xf32>
    %51 = vector.shape_cast %50 : vector<1x8x128xf32> to vector<8x128xf32>
    %52 = arith.subf %49, %51 : vector<8x128xf32>
    %53 = arith.mulf %52, %52 : vector<8x128xf32>
    %54 = vector.broadcast %13 : f32 to vector<8x128xf32>
    %55 = arith.mulf %54, %53 : vector<8x128xf32>
    %56 = arith.addf %47, %55 : vector<8x128xf32>
    %57 = vector.extract_strided_slice %30 {offsets = [3, 0, 0], sizes = [1, 8, 128], strides = [1, 1, 1]} : vector<4x8x128xf32> to vector<1x8x128xf32>
    %58 = vector.shape_cast %57 : vector<1x8x128xf32> to vector<8x128xf32>
    %59 = vector.extract_strided_slice %1 {offsets = [3, 0, 0], sizes = [1, 8, 128], strides = [1, 1, 1]} : vector<4x8x128xf32> to vector<1x8x128xf32>
    %60 = vector.shape_cast %59 : vector<1x8x128xf32> to vector<8x128xf32>
    %61 = arith.subf %58, %60 : vector<8x128xf32>
    %62 = arith.mulf %61, %61 : vector<8x128xf32>
    %63 = vector.broadcast %14 : f32 to vector<8x128xf32>
    %64 = arith.mulf %63, %62 : vector<8x128xf32>
    %65 = arith.addf %56, %64 : vector<8x128xf32>
    %cst_25 = arith.constant 1.000000e+00 : f32
    %66 = arith.mulf %15, %cst_25 : f32
    %67 = arith.addf %26, %66 : f32
    %68 = vector.broadcast %67 : f32 to vector<8x128xf32>
    %69 = arith.addf %65, %68 : vector<8x128xf32>
    %70 = math.exp %69 : vector<8x128xf32>
    %cst_26 = arith.constant 0.000000e+00 : f32
    %71 = vector.broadcast %cst_26 : f32 to vector<8x128xf32>
    %72 = arith.select %29, %70, %71 : vector<8x128xi1>, vector<8x128xf32>
    %73 = arith.addf %22, %72 : vector<8x128xf32>
    %74 = vector.shape_cast %72 : vector<8x128xf32> to vector<1x8x128xf32>
    %75 = vector.extract_strided_slice %30 {offsets = [0, 0, 0], sizes = [3, 8, 128], strides = [1, 1, 1]} : vector<4x8x128xf32> to vector<3x8x128xf32>
    %76 = vector.broadcast %74 : vector<1x8x128xf32> to vector<3x8x128xf32>
    %77 = arith.mulf %76, %75 : vector<3x8x128xf32>
    %78 = arith.addf %23, %77 : vector<3x8x128xf32>
    %c0_27 = arith.constant 0 : index
    %c8_28 = arith.constant 8 : index
    %c127_29 = arith.constant 127 : index
    %79 = vector.load %arg7[%c0_27, %c8_28, %c127_29] : memref<4x24x384xf32, #tpu.memory_space<vmem>>, vector<4x8x128xf32>
    %80 = vector.extract_strided_slice %79 {offsets = [0, 0, 0], sizes = [1, 8, 128], strides = [1, 1, 1]} : vector<4x8x128xf32> to vector<1x8x128xf32>
    %81 = vector.shape_cast %80 : vector<1x8x128xf32> to vector<8x128xf32>
    %82 = vector.extract_strided_slice %1 {offsets = [0, 0, 0], sizes = [1, 8, 128], strides = [1, 1, 1]} : vector<4x8x128xf32> to vector<1x8x128xf32>
    %83 = vector.shape_cast %82 : vector<1x8x128xf32> to vector<8x128xf32>
    %84 = arith.subf %81, %83 : vector<8x128xf32>
    %85 = arith.mulf %84, %84 : vector<8x128xf32>
    %86 = vector.broadcast %11 : f32 to vector<8x128xf32>
    %87 = arith.mulf %86, %85 : vector<8x128xf32>
    %88 = vector.extract_strided_slice %79 {offsets = [1, 0, 0], sizes = [1, 8, 128], strides = [1, 1, 1]} : vector<4x8x128xf32> to vector<1x8x128xf32>
    %89 = vector.shape_cast %88 : vector<1x8x128xf32> to vector<8x128xf32>
    %90 = vector.extract_strided_slice %1 {offsets = [1, 0, 0], sizes = [1, 8, 128], strides = [1, 1, 1]} : vector<4x8x128xf32> to vector<1x8x128xf32>
    %91 = vector.shape_cast %90 : vector<1x8x128xf32> to vector<8x128xf32>
    %92 = arith.subf %89, %91 : vector<8x128xf32>
    %93 = arith.mulf %92, %92 : vector<8x128xf32>
    %94 = vector.broadcast %12 : f32 to vector<8x128xf32>
    %95 = arith.mulf %94, %93 : vector<8x128xf32>
    %96 = arith.addf %87, %95 : vector<8x128xf32>
    %97 = vector.extract_strided_slice %79 {offsets = [2, 0, 0], sizes = [1, 8, 128], strides = [1, 1, 1]} : vector<4x8x128xf32> to vector<1x8x128xf32>
    %98 = vector.shape_cast %97 : vector<1x8x128xf32> to vector<8x128xf32>
    %99 = vector.extract_strided_slice %1 {offsets = [2, 0, 0], sizes = [1, 8, 128], strides = [1, 1, 1]} : vector<4x8x128xf32> to vector<1x8x128xf32>
    %100 = vector.shape_cast %99 : vector<1x8x128xf32> to vector<8x128xf32>
    %101 = arith.subf %98, %100 : vector<8x128xf32>
    %102 = arith.mulf %101, %101 : vector<8x128xf32>
    %103 = vector.broadcast %13 : f32 to vector<8x128xf32>
    %104 = arith.mulf %103, %102 : vector<8x128xf32>
    %105 = arith.addf %96, %104 : vector<8x128xf32>
    %106 = vector.extract_strided_slice %79 {offsets = [3, 0, 0], sizes = [1, 8, 128], strides = [1, 1, 1]} : vector<4x8x128xf32> to vector<1x8x128xf32>
    %107 = vector.shape_cast %106 : vector<1x8x128xf32> to vector<8x128xf32>
    %108 = vector.extract_strided_slice %1 {offsets = [3, 0, 0], sizes = [1, 8, 128], strides = [1, 1, 1]} : vector<4x8x128xf32> to vector<1x8x128xf32>
    %109 = vector.shape_cast %108 : vector<1x8x128xf32> to vector<8x128xf32>
    %110 = arith.subf %107, %109 : vector<8x128xf32>
    %111 = arith.mulf %110, %110 : vector<8x128xf32>
    %112 = vector.broadcast %14 : f32 to vector<8x128xf32>
    %113 = arith.mulf %112, %111 : vector<8x128xf32>
    %114 = arith.addf %105, %113 : vector<8x128xf32>
    %cst_30 = arith.constant 0.000000e+00 : f32
    %115 = arith.mulf %15, %cst_30 : f32
    %116 = arith.addf %26, %115 : f32
    %117 = vector.broadcast %116 : f32 to vector<8x128xf32>
    %118 = arith.addf %114, %117 : vector<8x128xf32>
    %119 = math.exp %118 : vector<8x128xf32>
    %cst_31 = arith.constant 0.000000e+00 : f32
    %120 = vector.broadcast %cst_31 : f32 to vector<8x128xf32>
    %121 = arith.select %25, %119, %120 : vector<8x128xi1>, vector<8x128xf32>
    %122 = arith.addf %73, %121 : vector<8x128xf32>
    %123 = vector.shape_cast %121 : vector<8x128xf32> to vector<1x8x128xf32>
    %124 = vector.extract_strided_slice %79 {offsets = [0, 0, 0], sizes = [3, 8, 128], strides = [1, 1, 1]} : vector<4x8x128xf32> to vector<3x8x128xf32>
    %125 = vector.broadcast %123 : vector<1x8x128xf32> to vector<3x8x128xf32>
    %126 = arith.mulf %125, %124 : vector<3x8x128xf32>
    %127 = arith.addf %78, %126 : vector<3x8x128xf32>
    %c15_i32 = arith.constant 15 : i32
    %128 = vector.broadcast %c15_i32 : i32 to vector<8x128xi32>
    %129 = arith.cmpi slt, %20, %128 : vector<8x128xi32>
    %130 = arith.andi %129, %25 : vector<8x128xi1>
    %c0_32 = arith.constant 0 : index
    %c9 = arith.constant 9 : index
    %c127_33 = arith.constant 127 : index
    %131 = vector.load %arg7[%c0_32, %c9, %c127_33] : memref<4x24x384xf32, #tpu.memory_space<vmem>>, vector<4x8x128xf32>
    %132 = vector.extract_strided_slice %131 {offsets = [0, 0, 0], sizes = [1, 8, 128], strides = [1, 1, 1]} : vector<4x8x128xf32> to vector<1x8x128xf32>
    %133 = vector.shape_cast %132 : vector<1x8x128xf32> to vector<8x128xf32>
    %134 = vector.extract_strided_slice %1 {offsets = [0, 0, 0], sizes = [1, 8, 128], strides = [1, 1, 1]} : vector<4x8x128xf32> to vector<1x8x128xf32>
    %135 = vector.shape_cast %134 : vector<1x8x128xf32> to vector<8x128xf32>
    %136 = arith.subf %133, %135 : vector<8x128xf32>
    %137 = arith.mulf %136, %136 : vector<8x128xf32>
    %138 = vector.broadcast %11 : f32 to vector<8x128xf32>
    %139 = arith.mulf %138, %137 : vector<8x128xf32>
    %140 = vector.extract_strided_slice %131 {offsets = [1, 0, 0], sizes = [1, 8, 128], strides = [1, 1, 1]} : vector<4x8x128xf32> to vector<1x8x128xf32>
    %141 = vector.shape_cast %140 : vector<1x8x128xf32> to vector<8x128xf32>
    %142 = vector.extract_strided_slice %1 {offsets = [1, 0, 0], sizes = [1, 8, 128], strides = [1, 1, 1]} : vector<4x8x128xf32> to vector<1x8x128xf32>
    %143 = vector.shape_cast %142 : vector<1x8x128xf32> to vector<8x128xf32>
    %144 = arith.subf %141, %143 : vector<8x128xf32>
    %145 = arith.mulf %144, %144 : vector<8x128xf32>
    %146 = vector.broadcast %12 : f32 to vector<8x128xf32>
    %147 = arith.mulf %146, %145 : vector<8x128xf32>
    %148 = arith.addf %139, %147 : vector<8x128xf32>
    %149 = vector.extract_strided_slice %131 {offsets = [2, 0, 0], sizes = [1, 8, 128], strides = [1, 1, 1]} : vector<4x8x128xf32> to vector<1x8x128xf32>
    %150 = vector.shape_cast %149 : vector<1x8x128xf32> to vector<8x128xf32>
    %151 = vector.extract_strided_slice %1 {offsets = [2, 0, 0], sizes = [1, 8, 128], strides = [1, 1, 1]} : vector<4x8x128xf32> to vector<1x8x128xf32>
    %152 = vector.shape_cast %151 : vector<1x8x128xf32> to vector<8x128xf32>
    %153 = arith.subf %150, %152 : vector<8x128xf32>
    %154 = arith.mulf %153, %153 : vector<8x128xf32>
    %155 = vector.broadcast %13 : f32 to vector<8x128xf32>
    %156 = arith.mulf %155, %154 : vector<8x128xf32>
    %157 = arith.addf %148, %156 : vector<8x128xf32>
    %158 = vector.extract_strided_slice %131 {offsets = [3, 0, 0], sizes = [1, 8, 128], strides = [1, 1, 1]} : vector<4x8x128xf32> to vector<1x8x128xf32>
    %159 = vector.shape_cast %158 : vector<1x8x128xf32> to vector<8x128xf32>
    %160 = vector.extract_strided_slice %1 {offsets = [3, 0, 0], sizes = [1, 8, 128], strides = [1, 1, 1]} : vector<4x8x128xf32> to vector<1x8x128xf32>
    %161 = vector.shape_cast %160 : vector<1x8x128xf32> to vector<8x128xf32>
    %162 = arith.subf %159, %161 : vector<8x128xf32>
    %163 = arith.mulf %162, %162 : vector<8x128xf32>
    %164 = vector.broadcast %14 : f32 to vector<8x128xf32>
    %165 = arith.mulf %164, %163 : vector<8x128xf32>
    %166 = arith.addf %157, %165 : vector<8x128xf32>
    %cst_34 = arith.constant 1.000000e+00 : f32
    %167 = arith.mulf %15, %cst_34 : f32
    %168 = arith.addf %26, %167 : f32
    %169 = vector.broadcast %168 : f32 to vector<8x128xf32>
    %170 = arith.addf %166, %169 : vector<8x128xf32>
    %171 = math.exp %170 : vector<8x128xf32>
    %cst_35 = arith.constant 0.000000e+00 : f32
    %172 = vector.broadcast %cst_35 : f32 to vector<8x128xf32>
    %173 = arith.select %130, %171, %172 : vector<8x128xi1>, vector<8x128xf32>
    %174 = arith.addf %122, %173 : vector<8x128xf32>
    %175 = vector.shape_cast %173 : vector<8x128xf32> to vector<1x8x128xf32>
    %176 = vector.extract_strided_slice %131 {offsets = [0, 0, 0], sizes = [3, 8, 128], strides = [1, 1, 1]} : vector<4x8x128xf32> to vector<3x8x128xf32>
    %177 = vector.broadcast %175 : vector<1x8x128xf32> to vector<3x8x128xf32>
    %178 = arith.mulf %177, %176 : vector<3x8x128xf32>
    %179 = arith.addf %127, %178 : vector<3x8x128xf32>
    %cst_36 = arith.constant 0.000000e+00 : f32
    %180 = arith.mulf %16, %cst_36 : f32
    %c1_i32_37 = arith.constant 1 : i32
    %181 = vector.broadcast %c1_i32_37 : i32 to vector<8x128xi32>
    %182 = arith.cmpi sge, %20, %181 : vector<8x128xi32>
    %c0_38 = arith.constant 0 : index
    %c7_39 = arith.constant 7 : index
    %c128_40 = arith.constant 128 : index
    %183 = vector.load %arg7[%c0_38, %c7_39, %c128_40] : memref<4x24x384xf32, #tpu.memory_space<vmem>>, vector<4x8x128xf32>
    %184 = vector.extract_strided_slice %183 {offsets = [0, 0, 0], sizes = [1, 8, 128], strides = [1, 1, 1]} : vector<4x8x128xf32> to vector<1x8x128xf32>
    %185 = vector.shape_cast %184 : vector<1x8x128xf32> to vector<8x128xf32>
    %186 = vector.extract_strided_slice %1 {offsets = [0, 0, 0], sizes = [1, 8, 128], strides = [1, 1, 1]} : vector<4x8x128xf32> to vector<1x8x128xf32>
    %187 = vector.shape_cast %186 : vector<1x8x128xf32> to vector<8x128xf32>
    %188 = arith.subf %185, %187 : vector<8x128xf32>
    %189 = arith.mulf %188, %188 : vector<8x128xf32>
    %190 = vector.broadcast %11 : f32 to vector<8x128xf32>
    %191 = arith.mulf %190, %189 : vector<8x128xf32>
    %192 = vector.extract_strided_slice %183 {offsets = [1, 0, 0], sizes = [1, 8, 128], strides = [1, 1, 1]} : vector<4x8x128xf32> to vector<1x8x128xf32>
    %193 = vector.shape_cast %192 : vector<1x8x128xf32> to vector<8x128xf32>
    %194 = vector.extract_strided_slice %1 {offsets = [1, 0, 0], sizes = [1, 8, 128], strides = [1, 1, 1]} : vector<4x8x128xf32> to vector<1x8x128xf32>
    %195 = vector.shape_cast %194 : vector<1x8x128xf32> to vector<8x128xf32>
    %196 = arith.subf %193, %195 : vector<8x128xf32>
    %197 = arith.mulf %196, %196 : vector<8x128xf32>
    %198 = vector.broadcast %12 : f32 to vector<8x128xf32>
    %199 = arith.mulf %198, %197 : vector<8x128xf32>
    %200 = arith.addf %191, %199 : vector<8x128xf32>
    %201 = vector.extract_strided_slice %183 {offsets = [2, 0, 0], sizes = [1, 8, 128], strides = [1, 1, 1]} : vector<4x8x128xf32> to vector<1x8x128xf32>
    %202 = vector.shape_cast %201 : vector<1x8x128xf32> to vector<8x128xf32>
    %203 = vector.extract_strided_slice %1 {offsets = [2, 0, 0], sizes = [1, 8, 128], strides = [1, 1, 1]} : vector<4x8x128xf32> to vector<1x8x128xf32>
    %204 = vector.shape_cast %203 : vector<1x8x128xf32> to vector<8x128xf32>
    %205 = arith.subf %202, %204 : vector<8x128xf32>
    %206 = arith.mulf %205, %205 : vector<8x128xf32>
    %207 = vector.broadcast %13 : f32 to vector<8x128xf32>
    %208 = arith.mulf %207, %206 : vector<8x128xf32>
    %209 = arith.addf %200, %208 : vector<8x128xf32>
    %210 = vector.extract_strided_slice %183 {offsets = [3, 0, 0], sizes = [1, 8, 128], strides = [1, 1, 1]} : vector<4x8x128xf32> to vector<1x8x128xf32>
    %211 = vector.shape_cast %210 : vector<1x8x128xf32> to vector<8x128xf32>
    %212 = vector.extract_strided_slice %1 {offsets = [3, 0, 0], sizes = [1, 8, 128], strides = [1, 1, 1]} : vector<4x8x128xf32> to vector<1x8x128xf32>
    %213 = vector.shape_cast %212 : vector<1x8x128xf32> to vector<8x128xf32>
    %214 = arith.subf %211, %213 : vector<8x128xf32>
    %215 = arith.mulf %214, %214 : vector<8x128xf32>
    %216 = vector.broadcast %14 : f32 to vector<8x128xf32>
    %217 = arith.mulf %216, %215 : vector<8x128xf32>
    %218 = arith.addf %209, %217 : vector<8x128xf32>
    %cst_41 = arith.constant 1.000000e+00 : f32
    %219 = arith.mulf %15, %cst_41 : f32
    %220 = arith.addf %180, %219 : f32
    %221 = vector.broadcast %220 : f32 to vector<8x128xf32>
    %222 = arith.addf %218, %221 : vector<8x128xf32>
    %223 = math.exp %222 : vector<8x128xf32>
    %cst_42 = arith.constant 0.000000e+00 : f32
    %224 = vector.broadcast %cst_42 : f32 to vector<8x128xf32>
    %225 = arith.select %182, %223, %224 : vector<8x128xi1>, vector<8x128xf32>
    %226 = arith.addf %174, %225 : vector<8x128xf32>
    %227 = vector.shape_cast %225 : vector<8x128xf32> to vector<1x8x128xf32>
    %228 = vector.extract_strided_slice %183 {offsets = [0, 0, 0], sizes = [3, 8, 128], strides = [1, 1, 1]} : vector<4x8x128xf32> to vector<3x8x128xf32>
    %229 = vector.broadcast %227 : vector<1x8x128xf32> to vector<3x8x128xf32>
    %230 = arith.mulf %229, %228 : vector<3x8x128xf32>
    %231 = arith.addf %179, %230 : vector<3x8x128xf32>
    %c15_i32_43 = arith.constant 15 : i32
    %232 = vector.broadcast %c15_i32_43 : i32 to vector<8x128xi32>
    %233 = arith.cmpi slt, %20, %232 : vector<8x128xi32>
    %c0_44 = arith.constant 0 : index
    %c9_45 = arith.constant 9 : index
    %c128_46 = arith.constant 128 : index
    %234 = vector.load %arg7[%c0_44, %c9_45, %c128_46] : memref<4x24x384xf32, #tpu.memory_space<vmem>>, vector<4x8x128xf32>
    %235 = vector.extract_strided_slice %234 {offsets = [0, 0, 0], sizes = [1, 8, 128], strides = [1, 1, 1]} : vector<4x8x128xf32> to vector<1x8x128xf32>
    %236 = vector.shape_cast %235 : vector<1x8x128xf32> to vector<8x128xf32>
    %237 = vector.extract_strided_slice %1 {offsets = [0, 0, 0], sizes = [1, 8, 128], strides = [1, 1, 1]} : vector<4x8x128xf32> to vector<1x8x128xf32>
    %238 = vector.shape_cast %237 : vector<1x8x128xf32> to vector<8x128xf32>
    %239 = arith.subf %236, %238 : vector<8x128xf32>
    %240 = arith.mulf %239, %239 : vector<8x128xf32>
    %241 = vector.broadcast %11 : f32 to vector<8x128xf32>
    %242 = arith.mulf %241, %240 : vector<8x128xf32>
    %243 = vector.extract_strided_slice %234 {offsets = [1, 0, 0], sizes = [1, 8, 128], strides = [1, 1, 1]} : vector<4x8x128xf32> to vector<1x8x128xf32>
    %244 = vector.shape_cast %243 : vector<1x8x128xf32> to vector<8x128xf32>
    %245 = vector.extract_strided_slice %1 {offsets = [1, 0, 0], sizes = [1, 8, 128], strides = [1, 1, 1]} : vector<4x8x128xf32> to vector<1x8x128xf32>
    %246 = vector.shape_cast %245 : vector<1x8x128xf32> to vector<8x128xf32>
    %247 = arith.subf %244, %246 : vector<8x128xf32>
    %248 = arith.mulf %247, %247 : vector<8x128xf32>
    %249 = vector.broadcast %12 : f32 to vector<8x128xf32>
    %250 = arith.mulf %249, %248 : vector<8x128xf32>
    %251 = arith.addf %242, %250 : vector<8x128xf32>
    %252 = vector.extract_strided_slice %234 {offsets = [2, 0, 0], sizes = [1, 8, 128], strides = [1, 1, 1]} : vector<4x8x128xf32> to vector<1x8x128xf32>
    %253 = vector.shape_cast %252 : vector<1x8x128xf32> to vector<8x128xf32>
    %254 = vector.extract_strided_slice %1 {offsets = [2, 0, 0], sizes = [1, 8, 128], strides = [1, 1, 1]} : vector<4x8x128xf32> to vector<1x8x128xf32>
    %255 = vector.shape_cast %254 : vector<1x8x128xf32> to vector<8x128xf32>
    %256 = arith.subf %253, %255 : vector<8x128xf32>
    %257 = arith.mulf %256, %256 : vector<8x128xf32>
    %258 = vector.broadcast %13 : f32 to vector<8x128xf32>
    %259 = arith.mulf %258, %257 : vector<8x128xf32>
    %260 = arith.addf %251, %259 : vector<8x128xf32>
    %261 = vector.extract_strided_slice %234 {offsets = [3, 0, 0], sizes = [1, 8, 128], strides = [1, 1, 1]} : vector<4x8x128xf32> to vector<1x8x128xf32>
    %262 = vector.shape_cast %261 : vector<1x8x128xf32> to vector<8x128xf32>
    %263 = vector.extract_strided_slice %1 {offsets = [3, 0, 0], sizes = [1, 8, 128], strides = [1, 1, 1]} : vector<4x8x128xf32> to vector<1x8x128xf32>
    %264 = vector.shape_cast %263 : vector<1x8x128xf32> to vector<8x128xf32>
    %265 = arith.subf %262, %264 : vector<8x128xf32>
    %266 = arith.mulf %265, %265 : vector<8x128xf32>
    %267 = vector.broadcast %14 : f32 to vector<8x128xf32>
    %268 = arith.mulf %267, %266 : vector<8x128xf32>
    %269 = arith.addf %260, %268 : vector<8x128xf32>
    %cst_47 = arith.constant 1.000000e+00 : f32
    %270 = arith.mulf %15, %cst_47 : f32
    %271 = arith.addf %180, %270 : f32
    %272 = vector.broadcast %271 : f32 to vector<8x128xf32>
    %273 = arith.addf %269, %272 : vector<8x128xf32>
    %274 = math.exp %273 : vector<8x128xf32>
    %cst_48 = arith.constant 0.000000e+00 : f32
    %275 = vector.broadcast %cst_48 : f32 to vector<8x128xf32>
    %276 = arith.select %233, %274, %275 : vector<8x128xi1>, vector<8x128xf32>
    %277 = arith.addf %226, %276 : vector<8x128xf32>
    %278 = vector.shape_cast %276 : vector<8x128xf32> to vector<1x8x128xf32>
    %279 = vector.extract_strided_slice %234 {offsets = [0, 0, 0], sizes = [3, 8, 128], strides = [1, 1, 1]} : vector<4x8x128xf32> to vector<3x8x128xf32>
    %280 = vector.broadcast %278 : vector<1x8x128xf32> to vector<3x8x128xf32>
    %281 = arith.mulf %280, %279 : vector<3x8x128xf32>
    %282 = arith.addf %231, %281 : vector<3x8x128xf32>
    %c127_i32 = arith.constant 127 : i32
    %283 = vector.broadcast %c127_i32 : i32 to vector<8x128xi32>
    %284 = arith.cmpi slt, %21, %283 : vector<8x128xi32>
    %cst_49 = arith.constant 1.000000e+00 : f32
    %285 = arith.mulf %16, %cst_49 : f32
    %c1_i32_50 = arith.constant 1 : i32
    %286 = vector.broadcast %c1_i32_50 : i32 to vector<8x128xi32>
    %287 = arith.cmpi sge, %20, %286 : vector<8x128xi32>
    %288 = arith.andi %287, %284 : vector<8x128xi1>
    %c0_51 = arith.constant 0 : index
    %c7_52 = arith.constant 7 : index
    %c129 = arith.constant 129 : index
    %289 = vector.load %arg7[%c0_51, %c7_52, %c129] : memref<4x24x384xf32, #tpu.memory_space<vmem>>, vector<4x8x128xf32>
    %290 = vector.extract_strided_slice %289 {offsets = [0, 0, 0], sizes = [1, 8, 128], strides = [1, 1, 1]} : vector<4x8x128xf32> to vector<1x8x128xf32>
    %291 = vector.shape_cast %290 : vector<1x8x128xf32> to vector<8x128xf32>
    %292 = vector.extract_strided_slice %1 {offsets = [0, 0, 0], sizes = [1, 8, 128], strides = [1, 1, 1]} : vector<4x8x128xf32> to vector<1x8x128xf32>
    %293 = vector.shape_cast %292 : vector<1x8x128xf32> to vector<8x128xf32>
    %294 = arith.subf %291, %293 : vector<8x128xf32>
    %295 = arith.mulf %294, %294 : vector<8x128xf32>
    %296 = vector.broadcast %11 : f32 to vector<8x128xf32>
    %297 = arith.mulf %296, %295 : vector<8x128xf32>
    %298 = vector.extract_strided_slice %289 {offsets = [1, 0, 0], sizes = [1, 8, 128], strides = [1, 1, 1]} : vector<4x8x128xf32> to vector<1x8x128xf32>
    %299 = vector.shape_cast %298 : vector<1x8x128xf32> to vector<8x128xf32>
    %300 = vector.extract_strided_slice %1 {offsets = [1, 0, 0], sizes = [1, 8, 128], strides = [1, 1, 1]} : vector<4x8x128xf32> to vector<1x8x128xf32>
    %301 = vector.shape_cast %300 : vector<1x8x128xf32> to vector<8x128xf32>
    %302 = arith.subf %299, %301 : vector<8x128xf32>
    %303 = arith.mulf %302, %302 : vector<8x128xf32>
    %304 = vector.broadcast %12 : f32 to vector<8x128xf32>
    %305 = arith.mulf %304, %303 : vector<8x128xf32>
    %306 = arith.addf %297, %305 : vector<8x128xf32>
    %307 = vector.extract_strided_slice %289 {offsets = [2, 0, 0], sizes = [1, 8, 128], strides = [1, 1, 1]} : vector<4x8x128xf32> to vector<1x8x128xf32>
    %308 = vector.shape_cast %307 : vector<1x8x128xf32> to vector<8x128xf32>
    %309 = vector.extract_strided_slice %1 {offsets = [2, 0, 0], sizes = [1, 8, 128], strides = [1, 1, 1]} : vector<4x8x128xf32> to vector<1x8x128xf32>
    %310 = vector.shape_cast %309 : vector<1x8x128xf32> to vector<8x128xf32>
    %311 = arith.subf %308, %310 : vector<8x128xf32>
    %312 = arith.mulf %311, %311 : vector<8x128xf32>
    %313 = vector.broadcast %13 : f32 to vector<8x128xf32>
    %314 = arith.mulf %313, %312 : vector<8x128xf32>
    %315 = arith.addf %306, %314 : vector<8x128xf32>
    %316 = vector.extract_strided_slice %289 {offsets = [3, 0, 0], sizes = [1, 8, 128], strides = [1, 1, 1]} : vector<4x8x128xf32> to vector<1x8x128xf32>
    %317 = vector.shape_cast %316 : vector<1x8x128xf32> to vector<8x128xf32>
    %318 = vector.extract_strided_slice %1 {offsets = [3, 0, 0], sizes = [1, 8, 128], strides = [1, 1, 1]} : vector<4x8x128xf32> to vector<1x8x128xf32>
    %319 = vector.shape_cast %318 : vector<1x8x128xf32> to vector<8x128xf32>
    %320 = arith.subf %317, %319 : vector<8x128xf32>
    %321 = arith.mulf %320, %320 : vector<8x128xf32>
    %322 = vector.broadcast %14 : f32 to vector<8x128xf32>
    %323 = arith.mulf %322, %321 : vector<8x128xf32>
    %324 = arith.addf %315, %323 : vector<8x128xf32>
    %cst_53 = arith.constant 1.000000e+00 : f32
    %325 = arith.mulf %15, %cst_53 : f32
    %326 = arith.addf %285, %325 : f32
    %327 = vector.broadcast %326 : f32 to vector<8x128xf32>
    %328 = arith.addf %324, %327 : vector<8x128xf32>
    %329 = math.exp %328 : vector<8x128xf32>
    %cst_54 = arith.constant 0.000000e+00 : f32
    %330 = vector.broadcast %cst_54 : f32 to vector<8x128xf32>
    %331 = arith.select %288, %329, %330 : vector<8x128xi1>, vector<8x128xf32>
    %332 = arith.addf %277, %331 : vector<8x128xf32>
    %333 = vector.shape_cast %331 : vector<8x128xf32> to vector<1x8x128xf32>
    %334 = vector.extract_strided_slice %289 {offsets = [0, 0, 0], sizes = [3, 8, 128], strides = [1, 1, 1]} : vector<4x8x128xf32> to vector<3x8x128xf32>
    %335 = vector.broadcast %333 : vector<1x8x128xf32> to vector<3x8x128xf32>
    %336 = arith.mulf %335, %334 : vector<3x8x128xf32>
    %337 = arith.addf %282, %336 : vector<3x8x128xf32>
    %c0_55 = arith.constant 0 : index
    %c8_56 = arith.constant 8 : index
    %c129_57 = arith.constant 129 : index
    %338 = vector.load %arg7[%c0_55, %c8_56, %c129_57] : memref<4x24x384xf32, #tpu.memory_space<vmem>>, vector<4x8x128xf32>
    %339 = vector.extract_strided_slice %338 {offsets = [0, 0, 0], sizes = [1, 8, 128], strides = [1, 1, 1]} : vector<4x8x128xf32> to vector<1x8x128xf32>
    %340 = vector.shape_cast %339 : vector<1x8x128xf32> to vector<8x128xf32>
    %341 = vector.extract_strided_slice %1 {offsets = [0, 0, 0], sizes = [1, 8, 128], strides = [1, 1, 1]} : vector<4x8x128xf32> to vector<1x8x128xf32>
    %342 = vector.shape_cast %341 : vector<1x8x128xf32> to vector<8x128xf32>
    %343 = arith.subf %340, %342 : vector<8x128xf32>
    %344 = arith.mulf %343, %343 : vector<8x128xf32>
    %345 = vector.broadcast %11 : f32 to vector<8x128xf32>
    %346 = arith.mulf %345, %344 : vector<8x128xf32>
    %347 = vector.extract_strided_slice %338 {offsets = [1, 0, 0], sizes = [1, 8, 128], strides = [1, 1, 1]} : vector<4x8x128xf32> to vector<1x8x128xf32>
    %348 = vector.shape_cast %347 : vector<1x8x128xf32> to vector<8x128xf32>
    %349 = vector.extract_strided_slice %1 {offsets = [1, 0, 0], sizes = [1, 8, 128], strides = [1, 1, 1]} : vector<4x8x128xf32> to vector<1x8x128xf32>
    %350 = vector.shape_cast %349 : vector<1x8x128xf32> to vector<8x128xf32>
    %351 = arith.subf %348, %350 : vector<8x128xf32>
    %352 = arith.mulf %351, %351 : vector<8x128xf32>
    %353 = vector.broadcast %12 : f32 to vector<8x128xf32>
    %354 = arith.mulf %353, %352 : vector<8x128xf32>
    %355 = arith.addf %346, %354 : vector<8x128xf32>
    %356 = vector.extract_strided_slice %338 {offsets = [2, 0, 0], sizes = [1, 8, 128], strides = [1, 1, 1]} : vector<4x8x128xf32> to vector<1x8x128xf32>
    %357 = vector.shape_cast %356 : vector<1x8x128xf32> to vector<8x128xf32>
    %358 = vector.extract_strided_slice %1 {offsets = [2, 0, 0], sizes = [1, 8, 128], strides = [1, 1, 1]} : vector<4x8x128xf32> to vector<1x8x128xf32>
    %359 = vector.shape_cast %358 : vector<1x8x128xf32> to vector<8x128xf32>
    %360 = arith.subf %357, %359 : vector<8x128xf32>
    %361 = arith.mulf %360, %360 : vector<8x128xf32>
    %362 = vector.broadcast %13 : f32 to vector<8x128xf32>
    %363 = arith.mulf %362, %361 : vector<8x128xf32>
    %364 = arith.addf %355, %363 : vector<8x128xf32>
    %365 = vector.extract_strided_slice %338 {offsets = [3, 0, 0], sizes = [1, 8, 128], strides = [1, 1, 1]} : vector<4x8x128xf32> to vector<1x8x128xf32>
    %366 = vector.shape_cast %365 : vector<1x8x128xf32> to vector<8x128xf32>
    %367 = vector.extract_strided_slice %1 {offsets = [3, 0, 0], sizes = [1, 8, 128], strides = [1, 1, 1]} : vector<4x8x128xf32> to vector<1x8x128xf32>
    %368 = vector.shape_cast %367 : vector<1x8x128xf32> to vector<8x128xf32>
    %369 = arith.subf %366, %368 : vector<8x128xf32>
    %370 = arith.mulf %369, %369 : vector<8x128xf32>
    %371 = vector.broadcast %14 : f32 to vector<8x128xf32>
    %372 = arith.mulf %371, %370 : vector<8x128xf32>
    %373 = arith.addf %364, %372 : vector<8x128xf32>
    %cst_58 = arith.constant 0.000000e+00 : f32
    %374 = arith.mulf %15, %cst_58 : f32
    %375 = arith.addf %285, %374 : f32
    %376 = vector.broadcast %375 : f32 to vector<8x128xf32>
    %377 = arith.addf %373, %376 : vector<8x128xf32>
    %378 = math.exp %377 : vector<8x128xf32>
    %cst_59 = arith.constant 0.000000e+00 : f32
    %379 = vector.broadcast %cst_59 : f32 to vector<8x128xf32>
    %380 = arith.select %284, %378, %379 : vector<8x128xi1>, vector<8x128xf32>
    %381 = arith.addf %332, %380 : vector<8x128xf32>
    %382 = vector.shape_cast %380 : vector<8x128xf32> to vector<1x8x128xf32>
    %383 = vector.extract_strided_slice %338 {offsets = [0, 0, 0], sizes = [3, 8, 128], strides = [1, 1, 1]} : vector<4x8x128xf32> to vector<3x8x128xf32>
    %384 = vector.broadcast %382 : vector<1x8x128xf32> to vector<3x8x128xf32>
    %385 = arith.mulf %384, %383 : vector<3x8x128xf32>
    %386 = arith.addf %337, %385 : vector<3x8x128xf32>
    %c15_i32_60 = arith.constant 15 : i32
    %387 = vector.broadcast %c15_i32_60 : i32 to vector<8x128xi32>
    %388 = arith.cmpi slt, %20, %387 : vector<8x128xi32>
    %389 = arith.andi %388, %284 : vector<8x128xi1>
    %c0_61 = arith.constant 0 : index
    %c9_62 = arith.constant 9 : index
    %c129_63 = arith.constant 129 : index
    %390 = vector.load %arg7[%c0_61, %c9_62, %c129_63] : memref<4x24x384xf32, #tpu.memory_space<vmem>>, vector<4x8x128xf32>
    %391 = vector.extract_strided_slice %390 {offsets = [0, 0, 0], sizes = [1, 8, 128], strides = [1, 1, 1]} : vector<4x8x128xf32> to vector<1x8x128xf32>
    %392 = vector.shape_cast %391 : vector<1x8x128xf32> to vector<8x128xf32>
    %393 = vector.extract_strided_slice %1 {offsets = [0, 0, 0], sizes = [1, 8, 128], strides = [1, 1, 1]} : vector<4x8x128xf32> to vector<1x8x128xf32>
    %394 = vector.shape_cast %393 : vector<1x8x128xf32> to vector<8x128xf32>
    %395 = arith.subf %392, %394 : vector<8x128xf32>
    %396 = arith.mulf %395, %395 : vector<8x128xf32>
    %397 = vector.broadcast %11 : f32 to vector<8x128xf32>
    %398 = arith.mulf %397, %396 : vector<8x128xf32>
    %399 = vector.extract_strided_slice %390 {offsets = [1, 0, 0], sizes = [1, 8, 128], strides = [1, 1, 1]} : vector<4x8x128xf32> to vector<1x8x128xf32>
    %400 = vector.shape_cast %399 : vector<1x8x128xf32> to vector<8x128xf32>
    %401 = vector.extract_strided_slice %1 {offsets = [1, 0, 0], sizes = [1, 8, 128], strides = [1, 1, 1]} : vector<4x8x128xf32> to vector<1x8x128xf32>
    %402 = vector.shape_cast %401 : vector<1x8x128xf32> to vector<8x128xf32>
    %403 = arith.subf %400, %402 : vector<8x128xf32>
    %404 = arith.mulf %403, %403 : vector<8x128xf32>
    %405 = vector.broadcast %12 : f32 to vector<8x128xf32>
    %406 = arith.mulf %405, %404 : vector<8x128xf32>
    %407 = arith.addf %398, %406 : vector<8x128xf32>
    %408 = vector.extract_strided_slice %390 {offsets = [2, 0, 0], sizes = [1, 8, 128], strides = [1, 1, 1]} : vector<4x8x128xf32> to vector<1x8x128xf32>
    %409 = vector.shape_cast %408 : vector<1x8x128xf32> to vector<8x128xf32>
    %410 = vector.extract_strided_slice %1 {offsets = [2, 0, 0], sizes = [1, 8, 128], strides = [1, 1, 1]} : vector<4x8x128xf32> to vector<1x8x128xf32>
    %411 = vector.shape_cast %410 : vector<1x8x128xf32> to vector<8x128xf32>
    %412 = arith.subf %409, %411 : vector<8x128xf32>
    %413 = arith.mulf %412, %412 : vector<8x128xf32>
    %414 = vector.broadcast %13 : f32 to vector<8x128xf32>
    %415 = arith.mulf %414, %413 : vector<8x128xf32>
    %416 = arith.addf %407, %415 : vector<8x128xf32>
    %417 = vector.extract_strided_slice %390 {offsets = [3, 0, 0], sizes = [1, 8, 128], strides = [1, 1, 1]} : vector<4x8x128xf32> to vector<1x8x128xf32>
    %418 = vector.shape_cast %417 : vector<1x8x128xf32> to vector<8x128xf32>
    %419 = vector.extract_strided_slice %1 {offsets = [3, 0, 0], sizes = [1, 8, 128], strides = [1, 1, 1]} : vector<4x8x128xf32> to vector<1x8x128xf32>
    %420 = vector.shape_cast %419 : vector<1x8x128xf32> to vector<8x128xf32>
    %421 = arith.subf %418, %420 : vector<8x128xf32>
    %422 = arith.mulf %421, %421 : vector<8x128xf32>
    %423 = vector.broadcast %14 : f32 to vector<8x128xf32>
    %424 = arith.mulf %423, %422 : vector<8x128xf32>
    %425 = arith.addf %416, %424 : vector<8x128xf32>
    %cst_64 = arith.constant 1.000000e+00 : f32
    %426 = arith.mulf %15, %cst_64 : f32
    %427 = arith.addf %285, %426 : f32
    %428 = vector.broadcast %427 : f32 to vector<8x128xf32>
    %429 = arith.addf %425, %428 : vector<8x128xf32>
    %430 = math.exp %429 : vector<8x128xf32>
    %cst_65 = arith.constant 0.000000e+00 : f32
    %431 = vector.broadcast %cst_65 : f32 to vector<8x128xf32>
    %432 = arith.select %389, %430, %431 : vector<8x128xi1>, vector<8x128xf32>
    %433 = arith.addf %381, %432 : vector<8x128xf32>
    %434 = vector.shape_cast %432 : vector<8x128xf32> to vector<1x8x128xf32>
    %435 = vector.extract_strided_slice %390 {offsets = [0, 0, 0], sizes = [3, 8, 128], strides = [1, 1, 1]} : vector<4x8x128xf32> to vector<3x8x128xf32>
    %436 = vector.broadcast %434 : vector<1x8x128xf32> to vector<3x8x128xf32>
    %437 = arith.mulf %436, %435 : vector<3x8x128xf32>
    %438 = arith.addf %386, %437 : vector<3x8x128xf32>
    %439 = tpu.reciprocal %433 : vector<8x128xf32> -> vector<8x128xf32>
    %440 = vector.shape_cast %439 : vector<8x128xf32> to vector<1x8x128xf32>
    %441 = vector.broadcast %440 : vector<1x8x128xf32> to vector<3x8x128xf32>
    %442 = arith.mulf %438, %441 : vector<3x8x128xf32>
    %c0_66 = arith.constant 0 : index
    %c0_67 = arith.constant 0 : index
    %c0_68 = arith.constant 0 : index
    %c0_69 = arith.constant 0 : index
    %443 = vector.load %arg6[%c0_66, %c0_67, %c0_68, %c0_69] : memref<1x3x8x128xf32, #tpu.memory_space<vmem>>, vector<1x3x8x128xf32>
    %444 = vector.shape_cast %443 : vector<1x3x8x128xf32> to vector<3x8x128xf32>
    %445 = vector.shape_cast %442 : vector<3x8x128xf32> to vector<1x3x8x128xf32>
    tpu.vector_store %arg6[%c0_66, %c0_67, %c0_68, %c0_69], %445 {strides = array<i32>} : memref<1x3x8x128xf32, #tpu.memory_space<vmem>>, vector<1x3x8x128xf32>,
    return
  }
  func.func @transform_0(%arg0: i32, %arg1: i32) -> i32 {
    %c0_i32 = arith.constant 0 : i32
    %c0_i32_0 = arith.constant 0 : i32
    return %c0_i32 : i32
  }
  func.func @transform_1(%arg0: i32, %arg1: i32) -> (i32, i32, i32, i32) {
    %c1_i32 = arith.constant 1 : i32
    %0 = arith.muli %arg1, %c1_i32 : i32
    %c1_i32_0 = arith.constant 1 : i32
    %1 = arith.subi %0, %c1_i32_0 : i32
    %c0_i32 = arith.constant 0 : i32
    %2 = arith.maxsi %1, %c0_i32 : i32
    %c0_i32_1 = arith.constant 0 : i32
    %c0_i32_2 = arith.constant 0 : i32
    %c0_i32_3 = arith.constant 0 : i32
    return %arg0, %c0_i32_1, %2, %c0_i32_2 : i32, i32, i32, i32
  }
  func.func @transform_2(%arg0: i32, %arg1: i32) -> (i32, i32, i32, i32) {
    %c0_i32 = arith.constant 0 : i32
    %c0_i32_0 = arith.constant 0 : i32
    %c0_i32_1 = arith.constant 0 : i32
    return %arg0, %c0_i32, %arg1, %c0_i32_0 : i32, i32, i32, i32
  }
  func.func @transform_3(%arg0: i32, %arg1: i32) -> (i32, i32, i32, i32) {
    %c1_i32 = arith.constant 1 : i32
    %0 = arith.addi %arg1, %c1_i32 : i32
    %c1_i32_0 = arith.constant 1 : i32
    %1 = arith.muli %0, %c1_i32_0 : i32
    %c1_i32_1 = arith.constant 1 : i32
    %2 = arith.minsi %1, %c1_i32_1 : i32
    %c0_i32 = arith.constant 0 : i32
    %c0_i32_2 = arith.constant 0 : i32
    %c0_i32_3 = arith.constant 0 : i32
    return %arg0, %c0_i32, %2, %c0_i32_2 : i32, i32, i32, i32
  }
  func.func @transform_4(%arg0: i32, %arg1: i32) -> (i32, i32, i32, i32) {
    %c0_i32 = arith.constant 0 : i32
    %c0_i32_0 = arith.constant 0 : i32
    %c0_i32_1 = arith.constant 0 : i32
    return %arg0, %c0_i32, %arg1, %c0_i32_0 : i32, i32, i32, i32
  }
}

</mosaic_0001>

<llo_original>
// kernel: tpu_custom_call.1
$region0: #{tpu_custom_call.1}
  #allocation0 [shape = 'u32[]', space=smem, size = 0x4, offset = 0x4, fixed_abs, tag = 'smem constant byte address 0x4 - core index']
  #allocation1 [shape = 'u32[144,128]{1,0:T(1,128)}', space=vmem, size = 0x12000, scoped, tag = 'internal scratch']
  #allocation2 [shape = 'f32[4,24,384]{2,1,0:T(8,128)}', space=vmem, size = 0x24000, scoped, tag = 'scratch operand']
  %s0 = inlined_call_operand.hbm [shape: f32[6], index: 0, kind: input, shape index: {}]
  %s1 = inlined_call_operand.hbm [shape: f32[2,4,16,128], index: 1, kind: input, shape index: {}]
  %s2 = inlined_call_operand.hbm [shape: f32[2,4,16,128], index: 2, kind: input, shape index: {}]
  %s3 = inlined_call_operand.hbm [shape: f32[2,4,16,128], index: 3, kind: input, shape index: {}]
  %s4 = inlined_call_operand.hbm [shape: f32[2,3,16,128], index: 4, kind: output, shape index: {}]
  %s5 = sld [smem:[#allocation0]]
  $region65: #{tpu_custom_call.1} parent=0
    _
  %s7 = ssub.s32 1, %s5
  %s8 = scalar_select 0, %s7, %s5
  $region1: #{tpu_custom_call.1} parent=0
    #allocation3 [shape = 'u8[512]{0}', space=smem, size = 0x200, scoped, tag = 'input window, operand 0, single buffered']
    #allocation4 [shape = 's32[2]{0}', space=sflag, size = 0x8, scoped, tag = 'scoped memory for tpu_custom_call.1']
    #allocation5 [shape = 's32[2]{0}', space=sflag, size = 0x8, scoped, tag = 'scoped memory for tpu_custom_call.1']
    #allocation6 [shape = 's32[2]{0}', space=sflag, size = 0x8, scoped, tag = 'scoped memory for tpu_custom_call.1']
    #allocation7 [shape = 'u8[32768]{0}', space=vmem, size = 0x8000, scoped, tag = 'input window, operand 1']
    #allocation8 [shape = 'u8[32768]{0}', space=vmem, size = 0x8000, scoped, tag = 'input window, operand 2']
    #allocation9 [shape = 's32[2]{0}', space=sflag, size = 0x8, scoped, tag = 'scoped memory for tpu_custom_call.1']
    #allocation10 [shape = 'u8[32768]{0}', space=vmem, size = 0x8000, scoped, tag = 'input window, operand 3']
    #allocation11 [shape = 'u8[24576]{0}', space=vmem, size = 0x6000, scoped, tag = 'output window, operand 0']
    %9 = vsyncpa [#allocation6], 0
    %10 = vsyncpa [#allocation4], 0
    %s11 = scalar_lea.sflag [#allocation4], 1
    %12 = vsyncpa %s11, 0
    %13 = vsyncpa [#allocation9], 0
    %s14 = scalar_lea.sflag [#allocation9], 1
    %15 = vsyncpa %s14, 0
    %16 = vsyncpa [#allocation5], 0
    %s17 = scalar_lea.sflag [#allocation5], 1
    %18 = vsyncpa %s17, 0
    loop: start=0, step=1, limit=6
    $region2: #{tpu_custom_call.1} parent=1 // loop_pre_header
      _
    $region3: #{tpu_custom_call.1} parent=1 // loop_header
      %s20 = sphi 0, %s24
      %p21 = scmp.ge.s32.totalorder %s20, 6
      %s27 = sphi 0, %s39
      %s28 = sphi 0, %s35
      %s29 = sphi 0, %s27
      %s30 = sphi 0, %s28
      %s31 = sphi 0, %s29
      %s32 = sphi 0, %s30
      %s40 = sphi 0, %s40
      %s42 = sphi 0, %s40
      %s43 = sphi 0, %s42
      %s57 = sphi 0, %s43
      %s71 = sphi 0, %s73
      %s74 = sphi 0, %s71
      %s75 = sphi 0, %s74
      %s91 = sphi 0, %s75
      %s99 = sphi 0, %s101
      %s102 = sphi 0, %s99
      %s103 = sphi 0, %s102
      %s119 = sphi 0, %s103
      %s133 = sphi 0, %s135
      %s136 = sphi 0, %s133
      %s137 = sphi 0, %s136
      %s153 = sphi 0, %s137
      %s161 = sphi 0, %s163
      %s164 = sphi 0, %s161
      %s165 = sphi 0, %s164
      %s181 = sphi 0, %s165
    $region4: #{tpu_custom_call.1} parent=1 // loop_header_branch
      %23 = sbr.rel (%p21) target = $region8
    $region5: #{tpu_custom_call.1} parent=1 // loop_body
      %s25 = ssub.s32 %s20, 1
      %s26 = ssub.s32 %s20, 2
      %s33 = sadd.s32 1, %s28
      %p34 = scmp.ge.s32.totalorder %s33, 2
      %s35 = scalar_select %p34, 0, %s33
      %s36 = sadd.s32 1, %s27
      %s37 = scalar_select %p34, %s36, %s27
      %p38 = scmp.ge.s32.totalorder %s37, 2
      %s39 = scalar_select %p38, 0, %s37
      %s41 = sadd.s32 %s40, 1
      %p44 = scmp.eq.s32.totalorder %s20, 3
      %p45 = scmp.ne.s32.totalorder %s40, %s42
      %p46 = scmp.eq.s32.totalorder %s20, 0
      %p47 = por %p45, %p46
      %p48 = scmp.ne.s32.totalorder %s40, %s42
      %p49 = scmp.eq.s32.totalorder %s25, 3
      %p50 = por %p48, %p49
      %p51 = scmp.ne.s32.totalorder %s42, %s43
      %p52 = scmp.eq.s32.totalorder %s25, 0
      %p53 = por %p51, %p52
      %p54 = scmp.ne.s32.totalorder %s42, %s43
      %p55 = scmp.eq.s32.totalorder %s26, 3
      %p56 = por %p54, %p55
      %p58 = scmp.ne.s32.totalorder %s43, %s57
      %p59 = scmp.eq.s32.totalorder %s26, 0
      %p60 = por %p58, %p59
      %s61 = ssub.s32 %s28, 1
      %p62 = scmp.gt.s32.totalorder %s61, 0
      %s63 = scalar_select %p62, %s61, 0
      %s64 = ssub.s32 %s35, 1
      %p65 = scmp.gt.s32.totalorder %s64, 0
      %s66 = scalar_select %p65, %s64, 0
      %s67 = ssub.s32 %s27, %s39
      %s68 = ssub.s32 %s63, %s66
      %s69 = sor.u32 %s67, %s68
      %p70 = scmp.eq.s32.totalorder %s69, 0
      %s72 = sadd.s32 %s71, 1
      %s73 = scalar_select %p70, %s71, %s72
      %p76 = pneg %p70
      %p77 = scmp.eq.s32.totalorder %s20, 3
      %p78 = por %p76, %p77
      %p79 = scmp.ne.s32.totalorder %s71, %s74
      %p80 = scmp.eq.s32.totalorder %s20, 0
      %p81 = por %p79, %p80
      %p82 = scmp.ne.s32.totalorder %s71, %s74
      %p83 = scmp.eq.s32.totalorder %s25, 3
      %p84 = por %p82, %p83
      %p85 = scmp.ne.s32.totalorder %s74, %s75
      %p86 = scmp.eq.s32.totalorder %s25, 0
      %p87 = por %p85, %p86
      %p88 = scmp.ne.s32.totalorder %s74, %s75
      %p89 = scmp.eq.s32.totalorder %s26, 3
      %p90 = por %p88, %p89
      %p92 = scmp.ne.s32.totalorder %s75, %s91
      %p93 = scmp.eq.s32.totalorder %s26, 0
      %p94 = por %p92, %p93
      %s95 = ssub.s32 %s27, %s39
      %s96 = ssub.s32 %s28, %s35
      %s97 = sor.u32 %s95, %s96
      %p98 = scmp.eq.s32.totalorder %s97, 0
      %s100 = sadd.s32 %s99, 1
      %s101 = scalar_select %p98, %s99, %s100
      %p104 = pneg %p98
      %p105 = scmp.eq.s32.totalorder %s20, 3
      %p106 = por %p104, %p105
      %p107 = scmp.ne.s32.totalorder %s99, %s102
      %p108 = scmp.eq.s32.totalorder %s20, 0
      %p109 = por %p107, %p108
      %p110 = scmp.ne.s32.totalorder %s99, %s102
      %p111 = scmp.eq.s32.totalorder %s25, 3
      %p112 = por %p110, %p111
      %p113 = scmp.ne.s32.totalorder %s102, %s103
      %p114 = scmp.eq.s32.totalorder %s25, 0
      %p115 = por %p113, %p114
      %p116 = scmp.ne.s32.totalorder %s102, %s103
      %p117 = scmp.eq.s32.totalorder %s26, 3
      %p118 = por %p116, %p117
      %p120 = scmp.ne.s32.totalorder %s103, %s119
      %p121 = scmp.eq.s32.totalorder %s26, 0
      %p122 = por %p120, %p121
      %s123 = sadd.s32 %s28, 1
      %p124 = scmp.lt.s32.totalorder %s123, 1
      %s125 = scalar_select %p124, %s123, 1
      %s126 = sadd.s32 %s35, 1
      %p127 = scmp.lt.s32.totalorder %s126, 1
      %s128 = scalar_select %p127, %s126, 1
      %s129 = ssub.s32 %s27, %s39
      %s130 = ssub.s32 %s125, %s128
      %s131 = sor.u32 %s129, %s130
      %p132 = scmp.eq.s32.totalorder %s131, 0
      %s134 = sadd.s32 %s133, 1
      %s135 = scalar_select %p132, %s133, %s134
      %p138 = pneg %p132
      %p139 = scmp.eq.s32.totalorder %s20, 3
      %p140 = por %p138, %p139
      %p141 = scmp.ne.s32.totalorder %s133, %s136
      %p142 = scmp.eq.s32.totalorder %s20, 0
      %p143 = por %p141, %p142
      %p144 = scmp.ne.s32.totalorder %s133, %s136
      %p145 = scmp.eq.s32.totalorder %s25, 3
      %p146 = por %p144, %p145
      %p147 = scmp.ne.s32.totalorder %s136, %s137
      %p148 = scmp.eq.s32.totalorder %s25, 0
      %p149 = por %p147, %p148
      %p150 = scmp.ne.s32.totalorder %s136, %s137
      %p151 = scmp.eq.s32.totalorder %s26, 3
      %p152 = por %p150, %p151
      %p154 = scmp.ne.s32.totalorder %s137, %s153
      %p155 = scmp.eq.s32.totalorder %s26, 0
      %p156 = por %p154, %p155
      %s157 = ssub.s32 %s27, %s39
      %s158 = ssub.s32 %s28, %s35
      %s159 = sor.u32 %s157, %s158
      %p160 = scmp.eq.s32.totalorder %s159, 0
      %s162 = sadd.s32 %s161, 1
      %s163 = scalar_select %p160, %s161, %s162
      %p166 = pneg %p160
      %p167 = scmp.eq.s32.totalorder %s20, 3
      %p168 = por %p166, %p167
      %p169 = scmp.ne.s32.totalorder %s161, %s164
      %p170 = scmp.eq.s32.totalorder %s20, 0
      %p171 = por %p169, %p170
      %p172 = scmp.ne.s32.totalorder %s161, %s164
      %p173 = scmp.eq.s32.totalorder %s25, 3
      %p174 = por %p172, %p173
      %p175 = scmp.ne.s32.totalorder %s164, %s165
      %p176 = scmp.eq.s32.totalorder %s25, 0
      %p177 = por %p175, %p176
      %p178 = scmp.ne.s32.totalorder %s164, %s165
      %p179 = scmp.eq.s32.totalorder %s26, 3
      %p180 = por %p178, %p179
      %p182 = scmp.ne.s32.totalorder %s165, %s181
      %p183 = scmp.eq.s32.totalorder %s26, 0
      %p184 = por %p182, %p183
      %p185 = scmp.le.s32.totalorder 1, %s20
      %p186 = scmp.lt.s32.totalorder %s20, 5
      %p187 = pnand %p185, %p186
      %p188 = pneg %p187
      // Predicated region
      $region9: #{tpu_custom_call.1} parent=5 // pred_check
        _
      $region10: #{tpu_custom_call.1} parent=5 // pred_check_branch
        %190 = sbr.rel (%p187) target = $region12
      $region11: #{tpu_custom_call.1} parent=5 // pred_region
        %s191 = ssub.s32 %s20, 1
        // Predicated region
        $region13: #{tpu_custom_call.1} parent=11 // pred_check
          %p192 = pneg %p53
        $region14: #{tpu_custom_call.1} parent=11 // pred_check_branch
          %194 = sbr.rel (%p192) target = $region16
        $region15: #{tpu_custom_call.1} parent=11 // pred_region
          %s196 = ssub.s32 16, 16
          %197 = vsyncadd [#allocation6], %s196
          %200 = dma.hbm_to_smem %s0, 16, [#allocation3], [#allocation6]
        $region16: #{tpu_custom_call.1} parent=11 // pred_fallthru
          _
      $region12: #{tpu_custom_call.1} parent=5 // pred_fallthru
        _
      %p201 = scmp.lt.s32.totalorder %s20, 4
      // Predicated region
      $region17: #{tpu_custom_call.1} parent=5 // pred_check
        %p202 = pneg %p201
      $region18: #{tpu_custom_call.1} parent=5 // pred_check_branch
        %204 = sbr.rel (%p202) target = $region20
      $region19: #{tpu_custom_call.1} parent=5 // pred_region
        // Predicated region
        $region21: #{tpu_custom_call.1} parent=19 // pred_check
          %p205 = pneg %p81
        $region22: #{tpu_custom_call.1} parent=19 // pred_check_branch
          %207 = sbr.rel (%p205) target = $region24
        $region23: #{tpu_custom_call.1} parent=19 // pred_region
          %s208 = sand.u32 %s71, 1
          %s209 = scalar_lea.sflag [#allocation4], %s208
          %s210 = sand.u32 %s71, 1
          %s211 = smul.addr %s210, 32
          %s212 = scalar_lea.vmem [#allocation7], %s211
          %s213 = ssub.s32 %s28, 1
          %p214 = scmp.gt.s32.totalorder %s213, 0
          %s215 = scalar_select %p214, %s213, 0
          %s217 = ssub.s32 512, 512
          %218 = vsyncadd %s209, %s217
          %s219 = smul.addr %s27, 8
          %s220 = sadd.s32 %s215, %s219
          %s221 = smul.addr %s220, 128
          %s222 = scalar_lea.hbm %s1, %s221
          %s223 = sshll.u32 %s212, 4
          %s224 = int_to_ptr.vmem [resolvable:$true] %s223
          %229 = dma.hbm_to_vmem [thread:$0]  %s222, 512, %s224, %s209, 256, 128, 8
        $region24: #{tpu_custom_call.1} parent=19 // pred_fallthru
          _
        // Predicated region
        $region25: #{tpu_custom_call.1} parent=19 // pred_check
          %p230 = pneg %p109
        $region26: #{tpu_custom_call.1} parent=19 // pred_check_branch
          %232 = sbr.rel (%p230) target = $region28
        $region27: #{tpu_custom_call.1} parent=19 // pred_region
          %s233 = sand.u32 %s20, 1
          %s234 = scalar_lea.sflag [#allocation9], %s233
          %s235 = sand.u32 %s99, 1
          %s236 = smul.addr %s235, 32
          %s237 = scalar_lea.vmem [#allocation8], %s236
          %s239 = ssub.s32 512, 512
          %240 = vsyncadd %s234, %s239
          %s241 = smul.addr %s27, 8
          %s242 = sadd.s32 %s28, %s241
          %s243 = smul.addr %s242, 128
          %s244 = scalar_lea.hbm %s2, %s243
          %s245 = sshll.u32 %s237, 4
          %s246 = int_to_ptr.vmem [resolvable:$true] %s245
          %251 = dma.hbm_to_vmem [thread:$0]  %s244, 512, %s246, %s234, 256, 128, 8
        $region28: #{tpu_custom_call.1} parent=19 // pred_fallthru
          _
        // Predicated region
        $region29: #{tpu_custom_call.1} parent=19 // pred_check
          %p252 = pneg %p143
        $region30: #{tpu_custom_call.1} parent=19 // pred_check_branch
          %254 = sbr.rel (%p252) target = $region32
        $region31: #{tpu_custom_call.1} parent=19 // pred_region
          %s255 = sand.u32 %s20, 1
          %s256 = scalar_lea.sflag [#allocation9], %s255
          %s257 = sand.u32 %s133, 1
          %s258 = smul.addr %s257, 32
          %s259 = scalar_lea.vmem [#allocation10], %s258
          %s260 = sadd.s32 %s28, 1
          %p261 = scmp.lt.s32.totalorder %s260, 1
          %s262 = scalar_select %p261, %s260, 1
          %s264 = ssub.s32 512, 512
          %265 = vsyncadd %s256, %s264
          %s266 = smul.addr %s27, 8
          %s267 = sadd.s32 %s262, %s266
          %s268 = smul.addr %s267, 128
          %s269 = scalar_lea.hbm %s3, %s268
          %s270 = sshll.u32 %s259, 4
          %s271 = int_to_ptr.vmem [resolvable:$true] %s270
          %276 = dma.hbm_to_vmem [thread:$0]  %s269, 512, %s271, %s256, 256, 128, 8
        $region32: #{tpu_custom_call.1} parent=19 // pred_fallthru
          _
      $region20: #{tpu_custom_call.1} parent=5 // pred_fallthru
        _
      %p277 = scmp.le.s32.totalorder 1, %s20
      %p278 = scmp.lt.s32.totalorder %s20, 5
      %p279 = pnand %p277, %p278
      %p280 = pneg %p279
      // Predicated region
      $region33: #{tpu_custom_call.1} parent=5 // pred_check
        _
      $region34: #{tpu_custom_call.1} parent=5 // pred_check_branch
        %282 = sbr.rel (%p279) target = $region36
      $region35: #{tpu_custom_call.1} parent=5 // pred_region
        %s283 = ssub.s32 %s20, 1
        // Predicated region
        $region37: #{tpu_custom_call.1} parent=35 // pred_check
          %p284 = pneg %p53
        $region38: #{tpu_custom_call.1} parent=35 // pred_check_branch
          %286 = sbr.rel (%p284) target = $region40
        $region39: #{tpu_custom_call.1} parent=35 // pred_region
          %287 = dma.done [#allocation6], 16
        $region40: #{tpu_custom_call.1} parent=35 // pred_fallthru
          _
        %s288 = sand.u32 %s74, 1
        %s289 = scalar_lea.sflag [#allocation4], %s288
        %s290 = sand.u32 %s74, 1
        %s291 = smul.addr %s290, 32
        %s292 = scalar_lea.vmem [#allocation7], %s291
        // Predicated region
        $region41: #{tpu_custom_call.1} parent=35 // pred_check
          %p293 = pneg %p87
        $region42: #{tpu_custom_call.1} parent=35 // pred_check_branch
          %295 = sbr.rel (%p293) target = $region44
        $region43: #{tpu_custom_call.1} parent=35 // pred_region
          %296 = dma.done %s289, 512
        $region44: #{tpu_custom_call.1} parent=35 // pred_fallthru
          _
        %s297 = sand.u32 %s25, 1
        %s298 = scalar_lea.sflag [#allocation9], %s297
        %s299 = sand.u32 %s102, 1
        %s300 = smul.addr %s299, 32
        %s301 = scalar_lea.vmem [#allocation8], %s300
        // Predicated region
        $region45: #{tpu_custom_call.1} parent=35 // pred_check
          %p302 = pneg %p115
        $region46: #{tpu_custom_call.1} parent=35 // pred_check_branch
          %304 = sbr.rel (%p302) target = $region48
        $region47: #{tpu_custom_call.1} parent=35 // pred_region
          %305 = dma.done %s298, 512
        $region48: #{tpu_custom_call.1} parent=35 // pred_fallthru
          _
        %s306 = sand.u32 %s25, 1
        %s307 = scalar_lea.sflag [#allocation9], %s306
        %s308 = sand.u32 %s136, 1
        %s309 = smul.addr %s308, 32
        %s310 = scalar_lea.vmem [#allocation10], %s309
        // Predicated region
        $region49: #{tpu_custom_call.1} parent=35 // pred_check
          %p311 = pneg %p149
        $region50: #{tpu_custom_call.1} parent=35 // pred_check_branch
          %313 = sbr.rel (%p311) target = $region52
        $region51: #{tpu_custom_call.1} parent=35 // pred_region
          %314 = dma.done %s307, 512
        $region52: #{tpu_custom_call.1} parent=35 // pred_fallthru
          _
        %315 = sfence
        %p316 = pneg %p53
        %p317 = pneg %p50
        %s318 = sand.u32 %s74, 1
        %s319 = scalar_lea.sflag [#allocation4], %s318
        %s320 = sand.u32 %s74, 1
        %s321 = smul.addr %s320, 32
        %s322 = scalar_lea.vmem [#allocation7], %s321
        %p323 = pneg %p87
        %p324 = pneg %p84
        %s325 = sand.u32 %s25, 1
        %s326 = scalar_lea.sflag [#allocation9], %s325
        %s327 = sand.u32 %s102, 1
        %s328 = smul.addr %s327, 32
        %s329 = scalar_lea.vmem [#allocation8], %s328
        %p330 = pneg %p115
        %p331 = pneg %p112
        %s332 = sand.u32 %s25, 1
        %s333 = scalar_lea.sflag [#allocation9], %s332
        %s334 = sand.u32 %s136, 1
        %s335 = smul.addr %s334, 32
        %s336 = scalar_lea.vmem [#allocation10], %s335
        %p337 = pneg %p149
        %p338 = pneg %p146
        %p339 = pneg %p177
        %p340 = pneg %p174
        %s341 = sand.u32 %s164, 1
        %s342 = scalar_lea.sflag [#allocation5], %s341
        %s343 = sand.u32 %s164, 1
        %s344 = smul.addr %s343, 24
        %s345 = scalar_lea.vmem [#allocation11], %s344
        %s346 = ssub.s32 %s30, 1
        %p347 = scmp.gt.s32.totalorder %s346, 0
        %s348 = scalar_select %p347, %s346, 0
        %s349 = sadd.s32 %s30, 1
        %p350 = scmp.lt.s32.totalorder %s349, 1
        %s351 = scalar_select %p350, %s349, 1
        %v352 = vld [vmem:[%s301] sm:$0xff]
        %v353 = vld [vmem:[%s301 + $0x8] sm:$0xff]
        %v354 = vld [vmem:[%s301 + $0x10] sm:$0xff]
        %v355 = vld [vmem:[%s301 + $0x18] sm:$0xff]
        %v356 = vld [vmem:[%s292] sm:$0xff]
        %v357 = vld [vmem:[%s292 + $0x8] sm:$0xff]
        %v358 = vld [vmem:[%s292 + $0x10] sm:$0xff]
        %v359 = vld [vmem:[%s292 + $0x18] sm:$0xff]
        %v360 = vld [vmem:[%s310] sm:$0xff]
        %v361 = vld [vmem:[%s310 + $0x8] sm:$0xff]
        %v362 = vld [vmem:[%s310 + $0x10] sm:$0xff]
        %v363 = vld [vmem:[%s310 + $0x18] sm:$0xff]
        %364 = vst [vmem:[#allocation2] sm:$0xff] 0.0
        %365 = vst [vmem:[#allocation2 + $0x8] sm:$0xff] 0.0
        %366 = vst [vmem:[#allocation2 + $0x10] sm:$0xff] 0.0
        %367 = vst [vmem:[#allocation2 + $0x18] sm:$0xff] 0.0
        %368 = vst [vmem:[#allocation2 + $0x20] sm:$0xff] 0.0
        %369 = vst [vmem:[#allocation2 + $0x28] sm:$0xff] 0.0
        %370 = vst [vmem:[#allocation2 + $0x30] sm:$0xff] 0.0
        %371 = vst [vmem:[#allocation2 + $0x38] sm:$0xff] 0.0
        %372 = vst [vmem:[#allocation2 + $0x40] sm:$0xff] 0.0
        %373 = vst [vmem:[#allocation2 + $0x48] sm:$0xff] 0.0
        %374 = vst [vmem:[#allocation2 + $0x50] sm:$0xff] 0.0
        %375 = vst [vmem:[#allocation2 + $0x58] sm:$0xff] 0.0
        %376 = vst [vmem:[#allocation2 + $0x60] sm:$0xff] 0.0
        %377 = vst [vmem:[#allocation2 + $0x68] sm:$0xff] 0.0
        %378 = vst [vmem:[#allocation2 + $0x70] sm:$0xff] 0.0
        %379 = vst [vmem:[#allocation2 + $0x78] sm:$0xff] 0.0
        %380 = vst [vmem:[#allocation2 + $0x80] sm:$0xff] 0.0
        %381 = vst [vmem:[#allocation2 + $0x88] sm:$0xff] 0.0
        %382 = vst [vmem:[#allocation2 + $0x90] sm:$0xff] 0.0
        %383 = vst [vmem:[#allocation2 + $0x98] sm:$0xff] 0.0
        %384 = vst [vmem:[#allocation2 + $0xa0] sm:$0xff] 0.0
        %385 = vst [vmem:[#allocation2 + $0xa8] sm:$0xff] 0.0
        %386 = vst [vmem:[#allocation2 + $0xb0] sm:$0xff] 0.0
        %387 = vst [vmem:[#allocation2 + $0xb8] sm:$0xff] 0.0
        %388 = vst [vmem:[#allocation2 + $0xc0] sm:$0xff] 0.0
        %389 = vst [vmem:[#allocation2 + $0xc8] sm:$0xff] 0.0
        %390 = vst [vmem:[#allocation2 + $0xd0] sm:$0xff] 0.0
        %391 = vst [vmem:[#allocation2 + $0xd8] sm:$0xff] 0.0
        %392 = vst [vmem:[#allocation2 + $0xe0] sm:$0xff] 0.0
        %393 = vst [vmem:[#allocation2 + $0xe8] sm:$0xff] 0.0
        %394 = vst [vmem:[#allocation2 + $0xf0] sm:$0xff] 0.0
        %395 = vst [vmem:[#allocation2 + $0xf8] sm:$0xff] 0.0
        %396 = vst [vmem:[#allocation2 + $0x100] sm:$0xff] 0.0
        %397 = vst [vmem:[#allocation2 + $0x108] sm:$0xff] 0.0
        %398 = vst [vmem:[#allocation2 + $0x110] sm:$0xff] 0.0
        %399 = vst [vmem:[#allocation2 + $0x118] sm:$0xff] 0.0
        %400 = vst [vmem:[#allocation2 + $0x8] sm:$0xff] %v356
        %401 = vst [vmem:[#allocation2 + $0x50] sm:$0xff] %v357
        %402 = vst [vmem:[#allocation2 + $0x98] sm:$0xff] %v358
        %403 = vst [vmem:[#allocation2 + $0xe0] sm:$0xff] %v359
        %404 = vst [vmem:[#allocation2 + $0x20] sm:$0xff] %v352
        %405 = vst [vmem:[#allocation2 + $0x68] sm:$0xff] %v353
        %406 = vst [vmem:[#allocation2 + $0xb0] sm:$0xff] %v354
        %407 = vst [vmem:[#allocation2 + $0xf8] sm:$0xff] %v355
        %408 = vst [vmem:[#allocation2 + $0x38] sm:$0xff] %v360
        %409 = vst [vmem:[#allocation2 + $0x80] sm:$0xff] %v361
        %410 = vst [vmem:[#allocation2 + $0xc8] sm:$0xff] %v362
        %411 = vst [vmem:[#allocation2 + $0x110] sm:$0xff] %v363
        %s412 = sld [smem:[#allocation3]]
        %s413 = sld [smem:[#allocation3 + $0x1]]
        %s414 = sld [smem:[#allocation3 + $0x2]]
        %s415 = sld [smem:[#allocation3 + $0x3]]
        %s416 = sld [smem:[#allocation3 + $0x4]]
        %s417 = sld [smem:[#allocation3 + $0x5]]
        %s418 = smul.u32 %s30, 8
        %v419 = vlaneseq
        %v420 = vshrl.u32 %v419, 7
        %v421 = vstv %s418
        %v422 = vadd.s32 %v421, %v420
        %v423 = vlaneseq
        %v424 = vand.u32 %v423, 127
        %vm425 = vcmp.ge.s32.totalorder %v424, 1
        %vm426 = vcmp.ge.s32.totalorder %v422, 1
        %vm427 = vmand %vm426, %vm425
        %v428 = vld [vmem:[#allocation2] sm:$0x80]
        %v429 = vld [vmem:[#allocation2 + $0x8] sm:$0x80]
        %v430 = vld [vmem:[#allocation2 + $0x18] sm:$0x7f]
        %v431 = vld [vmem:[#allocation2 + $0x20] sm:$0x7f]
        %v432 = vld [vmem:[#allocation2 + $0x48] sm:$0x80]
        %v433 = vld [vmem:[#allocation2 + $0x50] sm:$0x80]
        %v434 = vld [vmem:[#allocation2 + $0x60] sm:$0x7f]
        %v435 = vld [vmem:[#allocation2 + $0x68] sm:$0x7f]
        %v436 = vld [vmem:[#allocation2 + $0x90] sm:$0x80]
        %v437 = vld [vmem:[#allocation2 + $0x98] sm:$0x80]
        %v438 = vld [vmem:[#allocation2 + $0xa8] sm:$0x7f]
        %v439 = vld [vmem:[#allocation2 + $0xb0] sm:$0x7f]
        %v440 = vld [vmem:[#allocation2 + $0xd8] sm:$0x80]
        %v441 = vld [vmem:[#allocation2 + $0xe0] sm:$0x80]
        %v442 = vld [vmem:[#allocation2 + $0xf0] sm:$0x7f]
        %v443 = vld [vmem:[#allocation2 + $0xf8] sm:$0x7f]
        %v445 = vrot.slane %v352, 1
        %446 = vrot.lane.b32.xlu0 %v445, 127
        %v447 = vpop.permute.xlu0 %446
        %v449 = vsub.f32 %v428, %v447
        %v450 = vsub.f32 %v429, %v447
        %v451 = vsub.f32 %v430, %v447
        %v452 = vsub.f32 %v431, %v447
        %v453 = vmul.f32 %v449, %v449
        %v454 = vmul.f32 %v450, %v450
        %v455 = vmul.f32 %v451, %v451
        %v456 = vmul.f32 %v452, %v452
        %v457 = vstv %s412
        %v458 = vmul.f32 %v457, %v453
        %v459 = vmul.f32 %v457, %v454
        %v460 = vmul.f32 %v457, %v455
        %v461 = vmul.f32 %v457, %v456
        %v463 = vrot.slane %v353, 1
        %464 = vrot.lane.b32.xlu0 %v463, 127
        %v465 = vpop.permute.xlu0 %464
        %v467 = vsub.f32 %v432, %v465
        %v468 = vsub.f32 %v433, %v465
        %v469 = vsub.f32 %v434, %v465
        %v470 = vsub.f32 %v435, %v465
        %v471 = vmul.f32 %v467, %v467
        %v472 = vmul.f32 %v468, %v468
        %v473 = vmul.f32 %v469, %v469
        %v474 = vmul.f32 %v470, %v470
        %v475 = vstv %s413
        %v476 = vmul.f32 %v475, %v471
        %v477 = vmul.f32 %v475, %v472
        %v478 = vmul.f32 %v475, %v473
        %v479 = vmul.f32 %v475, %v474
        %v480 = vadd.f32 %v458, %v476
        %v481 = vadd.f32 %v459, %v477
        %v482 = vadd.f32 %v460, %v478
        %v483 = vadd.f32 %v461, %v479
        %v485 = vrot.slane %v354, 1
        %486 = vrot.lane.b32.xlu0 %v485, 127
        %v487 = vpop.permute.xlu0 %486
        %v489 = vsub.f32 %v436, %v487
        %v490 = vsub.f32 %v437, %v487
        %v491 = vsub.f32 %v438, %v487
        %v492 = vsub.f32 %v439, %v487
        %v493 = vmul.f32 %v489, %v489
        %v494 = vmul.f32 %v490, %v490
        %v495 = vmul.f32 %v491, %v491
        %v496 = vmul.f32 %v492, %v492
        %v497 = vstv %s414
        %v498 = vmul.f32 %v497, %v493
        %v499 = vmul.f32 %v497, %v494
        %v500 = vmul.f32 %v497, %v495
        %v501 = vmul.f32 %v497, %v496
        %v502 = vadd.f32 %v480, %v498
        %v503 = vadd.f32 %v481, %v499
        %v504 = vadd.f32 %v482, %v500
        %v505 = vadd.f32 %v483, %v501
        %v507 = vrot.slane %v355, 1
        %508 = vrot.lane.b32.xlu0 %v507, 127
        %v509 = vpop.permute.xlu0 %508
        %v511 = vsub.f32 %v440, %v509
        %v512 = vsub.f32 %v441, %v509
        %v513 = vsub.f32 %v442, %v509
        %v514 = vsub.f32 %v443, %v509
        %v515 = vmul.f32 %v511, %v511
        %v516 = vmul.f32 %v512, %v512
        %v517 = vmul.f32 %v513, %v513
        %v518 = vmul.f32 %v514, %v514
        %v519 = vstv %s415
        %v520 = vmul.f32 %v519, %v515
        %v521 = vmul.f32 %v519, %v516
        %v522 = vmul.f32 %v519, %v517
        %v523 = vmul.f32 %v519, %v518
        %v524 = vadd.f32 %v502, %v520
        %v525 = vadd.f32 %v503, %v521
        %v526 = vadd.f32 %v504, %v522
        %v527 = vadd.f32 %v505, %v523
        %s528 = sadd.f32 %s417, %s416
        %v529 = vstv %s528
        %v530 = vadd.f32 %v524, %v529
        %v531 = vadd.f32 %v525, %v529
        %v532 = vadd.f32 %v526, %v529
        %v533 = vadd.f32 %v527, %v529
        %v534 = vmul.f32 %v530, 1.442695
        %v535 = vpow.pop %v534
        %v536 = vmul.f32 %v531, 1.442695
        %v537 = vpow.pop %v536
        %v538 = vmul.f32 %v532, 1.442695
        %v539 = vpow.pop %v538
        %v540 = vmul.f32 %v533, 1.442695
        %v541 = vpow.pop %v540
        %vm546 = vcmask 1040384
        %v547 = vrot.slane %v535, 7
        %v548 = vrot.slane %v539, 7
        %v549 = vsel %vm546, %v547, %v548
        %v550 = vrot.slane %v537, 7
        %v551 = vrot.slane %v541, 7
        %v552 = vsel %vm546, %v550, %v551
        %553 = vrot.lane.b32.xlu0 %v549, 1
        %v554 = vpop.permute.xlu0 %553
        %555 = vrot.lane.b32.xlu0 %v552, 1
        %v556 = vpop.permute.xlu0 %555
        %vm557 = vcmask 7168
        %v558 = vsel %vm557, %v554, %v556
        %v560 = vsel %vm427, %v558, 0.0
        %v561 = vadd.f32 %v560, 1.0
        %v574 = vrot.slane %v428, 7
        %v575 = vrot.slane %v430, 7
        %v576 = vsel %vm546, %v574, %v575
        %v577 = vrot.slane %v429, 7
        %v578 = vrot.slane %v431, 7
        %v579 = vsel %vm546, %v577, %v578
        %v580 = vrot.slane %v432, 7
        %v581 = vrot.slane %v434, 7
        %v582 = vsel %vm546, %v580, %v581
        %v583 = vrot.slane %v433, 7
        %v584 = vrot.slane %v435, 7
        %v585 = vsel %vm546, %v583, %v584
        %v586 = vrot.slane %v436, 7
        %v587 = vrot.slane %v438, 7
        %v588 = vsel %vm546, %v586, %v587
        %v589 = vrot.slane %v437, 7
        %v590 = vrot.slane %v439, 7
        %v591 = vsel %vm546, %v589, %v590
        %592 = vrot.lane.b32.xlu0 %v576, 1
        %v593 = vpop.permute.xlu0 %592
        %594 = vrot.lane.b32.xlu0 %v579, 1
        %v595 = vpop.permute.xlu0 %594
        %596 = vrot.lane.b32.xlu0 %v582, 1
        %v597 = vpop.permute.xlu0 %596
        %598 = vrot.lane.b32.xlu0 %v585, 1
        %v599 = vpop.permute.xlu0 %598
        %600 = vrot.lane.b32.xlu0 %v588, 1
        %v601 = vpop.permute.xlu0 %600
        %602 = vrot.lane.b32.xlu0 %v591, 1
        %v603 = vpop.permute.xlu0 %602
        %v604 = vsel %vm557, %v593, %v595
        %v605 = vsel %vm557, %v597, %v599
        %v606 = vsel %vm557, %v601, %v603
        %v610 = vmul.f32 %v560, %v604
        %v611 = vmul.f32 %v560, %v605
        %v612 = vmul.f32 %v560, %v606
        %v613 = vadd.f32 %v352, %v610
        %v614 = vadd.f32 %v353, %v611
        %v615 = vadd.f32 %v354, %v612
        %v616 = vld [vmem:[#allocation2 + $0x18] sm:$0xff]
        %v617 = vld [vmem:[#allocation2 + $0x20] sm:$0xff]
        %v618 = vld [vmem:[#allocation2 + $0x60] sm:$0xff]
        %v619 = vld [vmem:[#allocation2 + $0x68] sm:$0xff]
        %v620 = vld [vmem:[#allocation2 + $0xa8] sm:$0xff]
        %v621 = vld [vmem:[#allocation2 + $0xb0] sm:$0xff]
        %v622 = vld [vmem:[#allocation2 + $0xf0] sm:$0xff]
        %v623 = vld [vmem:[#allocation2 + $0xf8] sm:$0xff]
        %624 = vrot.lane.b32.xlu0 %v352, 127
        %v625 = vpop.permute.xlu0 %624
        %v627 = vsub.f32 %v616, %v625
        %v628 = vsub.f32 %v617, %v625
        %v629 = vmul.f32 %v627, %v627
        %v630 = vmul.f32 %v628, %v628
        %v631 = vmul.f32 %v457, %v629
        %v632 = vmul.f32 %v457, %v630
        %633 = vrot.lane.b32.xlu0 %v353, 127
        %v634 = vpop.permute.xlu0 %633
        %v636 = vsub.f32 %v618, %v634
        %v637 = vsub.f32 %v619, %v634
        %v638 = vmul.f32 %v636, %v636
        %v639 = vmul.f32 %v637, %v637
        %v640 = vmul.f32 %v475, %v638
        %v641 = vmul.f32 %v475, %v639
        %v642 = vadd.f32 %v631, %v640
        %v643 = vadd.f32 %v632, %v641
        %644 = vrot.lane.b32.xlu0 %v354, 127
        %v645 = vpop.permute.xlu0 %644
        %v647 = vsub.f32 %v620, %v645
        %v648 = vsub.f32 %v621, %v645
        %v649 = vmul.f32 %v647, %v647
        %v650 = vmul.f32 %v648, %v648
        %v651 = vmul.f32 %v497, %v649
        %v652 = vmul.f32 %v497, %v650
        %v653 = vadd.f32 %v642, %v651
        %v654 = vadd.f32 %v643, %v652
        %655 = vrot.lane.b32.xlu0 %v355, 127
        %v656 = vpop.permute.xlu0 %655
        %v658 = vsub.f32 %v622, %v656
        %v659 = vsub.f32 %v623, %v656
        %v660 = vmul.f32 %v658, %v658
        %v661 = vmul.f32 %v659, %v659
        %v662 = vmul.f32 %v519, %v660
        %v663 = vmul.f32 %v519, %v661
        %v664 = vadd.f32 %v653, %v662
        %v665 = vadd.f32 %v654, %v663
        %s666 = smul.f32 %s416, 0.0
        %s667 = sadd.f32 %s417, %s666
        %v668 = vstv %s667
        %v669 = vadd.f32 %v664, %v668
        %v670 = vadd.f32 %v665, %v668
        %v671 = vmul.f32 %v669, 1.442695
        %v672 = vpow.pop %v671
        %v673 = vmul.f32 %v670, 1.442695
        %v674 = vpow.pop %v673
        %677 = vrot.lane.b32.xlu0 %v672, 1
        %v678 = vpop.permute.xlu0 %677
        %679 = vrot.lane.b32.xlu0 %v674, 1
        %v680 = vpop.permute.xlu0 %679
        %v681 = vsel %vm557, %v678, %v680
        %v683 = vsel %vm425, %v681, 0.0
        %v684 = vadd.f32 %v561, %v683
        %691 = vrot.lane.b32.xlu0 %v616, 1
        %v692 = vpop.permute.xlu0 %691
        %693 = vrot.lane.b32.xlu0 %v617, 1
        %v694 = vpop.permute.xlu0 %693
        %695 = vrot.lane.b32.xlu0 %v618, 1
        %v696 = vpop.permute.xlu0 %695
        %697 = vrot.lane.b32.xlu0 %v619, 1
        %v698 = vpop.permute.xlu0 %697
        %699 = vrot.lane.b32.xlu0 %v620, 1
        %v700 = vpop.permute.xlu0 %699
        %701 = vrot.lane.b32.xlu0 %v621, 1
        %v702 = vpop.permute.xlu0 %701
        %v703 = vsel %vm557, %v692, %v694
        %v704 = vsel %vm557, %v696, %v698
        %v705 = vsel %vm557, %v700, %v702
        %v709 = vmul.f32 %v683, %v703
        %v710 = vmul.f32 %v683, %v704
        %v711 = vmul.f32 %v683, %v705
        %v712 = vadd.f32 %v613, %v709
        %v713 = vadd.f32 %v614, %v710
        %v714 = vadd.f32 %v615, %v711
        %vm715 = vcmp.lt.s32.totalorder %v422, 15
        %vm716 = vmand %vm715, %vm425
        %v717 = vld [vmem:[#allocation2 + $0x18] sm:$0xfe]
        %v718 = vld [vmem:[#allocation2 + $0x20] sm:$0xfe]
        %v719 = vld [vmem:[#allocation2 + $0x30] sm:$0x1]
        %v720 = vld [vmem:[#allocation2 + $0x38] sm:$0x1]
        %v721 = vld [vmem:[#allocation2 + $0x60] sm:$0xfe]
        %v722 = vld [vmem:[#allocation2 + $0x68] sm:$0xfe]
        %v723 = vld [vmem:[#allocation2 + $0x78] sm:$0x1]
        %v724 = vld [vmem:[#allocation2 + $0x80] sm:$0x1]
        %v725 = vld [vmem:[#allocation2 + $0xa8] sm:$0xfe]
        %v726 = vld [vmem:[#allocation2 + $0xb0] sm:$0xfe]
        %v727 = vld [vmem:[#allocation2 + $0xc0] sm:$0x1]
        %v728 = vld [vmem:[#allocation2 + $0xc8] sm:$0x1]
        %v729 = vld [vmem:[#allocation2 + $0xf0] sm:$0xfe]
        %v730 = vld [vmem:[#allocation2 + $0xf8] sm:$0xfe]
        %v731 = vld [vmem:[#allocation2 + $0x108] sm:$0x1]
        %v732 = vld [vmem:[#allocation2 + $0x110] sm:$0x1]
        %v733 = vrot.slane %v352, 7
        %734 = vrot.lane.b32.xlu0 %v733, 127
        %v735 = vpop.permute.xlu0 %734
        %v737 = vsub.f32 %v717, %v735
        %v738 = vsub.f32 %v718, %v735
        %v739 = vsub.f32 %v719, %v735
        %v740 = vsub.f32 %v720, %v735
        %v741 = vmul.f32 %v737, %v737
        %v742 = vmul.f32 %v738, %v738
        %v743 = vmul.f32 %v739, %v739
        %v744 = vmul.f32 %v740, %v740
        %v745 = vmul.f32 %v457, %v741
        %v746 = vmul.f32 %v457, %v742
        %v747 = vmul.f32 %v457, %v743
        %v748 = vmul.f32 %v457, %v744
        %v749 = vrot.slane %v353, 7
        %750 = vrot.lane.b32.xlu0 %v749, 127
        %v751 = vpop.permute.xlu0 %750
        %v753 = vsub.f32 %v721, %v751
        %v754 = vsub.f32 %v722, %v751
        %v755 = vsub.f32 %v723, %v751
        %v756 = vsub.f32 %v724, %v751
        %v757 = vmul.f32 %v753, %v753
        %v758 = vmul.f32 %v754, %v754
        %v759 = vmul.f32 %v755, %v755
        %v760 = vmul.f32 %v756, %v756
        %v761 = vmul.f32 %v475, %v757
        %v762 = vmul.f32 %v475, %v758
        %v763 = vmul.f32 %v475, %v759
        %v764 = vmul.f32 %v475, %v760
        %v765 = vadd.f32 %v745, %v761
        %v766 = vadd.f32 %v746, %v762
        %v767 = vadd.f32 %v747, %v763
        %v768 = vadd.f32 %v748, %v764
        %v769 = vrot.slane %v354, 7
        %770 = vrot.lane.b32.xlu0 %v769, 127
        %v771 = vpop.permute.xlu0 %770
        %v773 = vsub.f32 %v725, %v771
        %v774 = vsub.f32 %v726, %v771
        %v775 = vsub.f32 %v727, %v771
        %v776 = vsub.f32 %v728, %v771
        %v777 = vmul.f32 %v773, %v773
        %v778 = vmul.f32 %v774, %v774
        %v779 = vmul.f32 %v775, %v775
        %v780 = vmul.f32 %v776, %v776
        %v781 = vmul.f32 %v497, %v777
        %v782 = vmul.f32 %v497, %v778
        %v783 = vmul.f32 %v497, %v779
        %v784 = vmul.f32 %v497, %v780
        %v785 = vadd.f32 %v765, %v781
        %v786 = vadd.f32 %v766, %v782
        %v787 = vadd.f32 %v767, %v783
        %v788 = vadd.f32 %v768, %v784
        %v789 = vrot.slane %v355, 7
        %790 = vrot.lane.b32.xlu0 %v789, 127
        %v791 = vpop.permute.xlu0 %790
        %v793 = vsub.f32 %v729, %v791
        %v794 = vsub.f32 %v730, %v791
        %v795 = vsub.f32 %v731, %v791
        %v796 = vsub.f32 %v732, %v791
        %v797 = vmul.f32 %v793, %v793
        %v798 = vmul.f32 %v794, %v794
        %v799 = vmul.f32 %v795, %v795
        %v800 = vmul.f32 %v796, %v796
        %v801 = vmul.f32 %v519, %v797
        %v802 = vmul.f32 %v519, %v798
        %v803 = vmul.f32 %v519, %v799
        %v804 = vmul.f32 %v519, %v800
        %v805 = vadd.f32 %v785, %v801
        %v806 = vadd.f32 %v786, %v802
        %v807 = vadd.f32 %v787, %v803
        %v808 = vadd.f32 %v788, %v804
        %v809 = vadd.f32 %v805, %v529
        %v810 = vadd.f32 %v806, %v529
        %v811 = vadd.f32 %v807, %v529
        %v812 = vadd.f32 %v808, %v529
        %v813 = vmul.f32 %v809, 1.442695
        %v814 = vpow.pop %v813
        %v815 = vmul.f32 %v810, 1.442695
        %v816 = vpow.pop %v815
        %v817 = vmul.f32 %v811, 1.442695
        %v818 = vpow.pop %v817
        %v819 = vmul.f32 %v812, 1.442695
        %v820 = vpow.pop %v819
        %vm825 = vcmask 1046528
        %v826 = vrot.slane %v814, 1
        %v827 = vrot.slane %v818, 1
        %v828 = vsel %vm825, %v826, %v827
        %v829 = vrot.slane %v816, 1
        %v830 = vrot.slane %v820, 1
        %v831 = vsel %vm825, %v829, %v830
        %832 = vrot.lane.b32.xlu0 %v828, 1
        %v833 = vpop.permute.xlu0 %832
        %834 = vrot.lane.b32.xlu0 %v831, 1
        %v835 = vpop.permute.xlu0 %834
        %v836 = vsel %vm557, %v833, %v835
        %v838 = vsel %vm716, %v836, 0.0
        %v839 = vadd.f32 %v684, %v838
        %v852 = vrot.slane %v717, 1
        %v853 = vrot.slane %v719, 1
        %v854 = vsel %vm825, %v852, %v853
        %v855 = vrot.slane %v718, 1
        %v856 = vrot.slane %v720, 1
        %v857 = vsel %vm825, %v855, %v856
        %v858 = vrot.slane %v721, 1
        %v859 = vrot.slane %v723, 1
        %v860 = vsel %vm825, %v858, %v859
        %v861 = vrot.slane %v722, 1
        %v862 = vrot.slane %v724, 1
        %v863 = vsel %vm825, %v861, %v862
        %v864 = vrot.slane %v725, 1
        %v865 = vrot.slane %v727, 1
        %v866 = vsel %vm825, %v864, %v865
        %v867 = vrot.slane %v726, 1
        %v868 = vrot.slane %v728, 1
        %v869 = vsel %vm825, %v867, %v868
        %870 = vrot.lane.b32.xlu0 %v854, 1
        %v871 = vpop.permute.xlu0 %870
        %872 = vrot.lane.b32.xlu0 %v857, 1
        %v873 = vpop.permute.xlu0 %872
        %874 = vrot.lane.b32.xlu0 %v860, 1
        %v875 = vpop.permute.xlu0 %874
        %876 = vrot.lane.b32.xlu0 %v863, 1
        %v877 = vpop.permute.xlu0 %876
        %878 = vrot.lane.b32.xlu0 %v866, 1
        %v879 = vpop.permute.xlu0 %878
        %880 = vrot.lane.b32.xlu0 %v869, 1
        %v881 = vpop.permute.xlu0 %880
        %v882 = vsel %vm557, %v871, %v873
        %v883 = vsel %vm557, %v875, %v877
        %v884 = vsel %vm557, %v879, %v881
        %v888 = vmul.f32 %v838, %v882
        %v889 = vmul.f32 %v838, %v883
        %v890 = vmul.f32 %v838, %v884
        %v891 = vadd.f32 %v712, %v888
        %v892 = vadd.f32 %v713, %v889
        %v893 = vadd.f32 %v714, %v890
        %s894 = smul.f32 %s417, 0.0
        %v896 = vsub.f32 %v429, %v445
        %v897 = vsub.f32 %v431, %v445
        %v898 = vmul.f32 %v896, %v896
        %v899 = vmul.f32 %v897, %v897
        %v900 = vmul.f32 %v457, %v898
        %v901 = vmul.f32 %v457, %v899
        %v903 = vsub.f32 %v433, %v463
        %v904 = vsub.f32 %v435, %v463
        %v905 = vmul.f32 %v903, %v903
        %v906 = vmul.f32 %v904, %v904
        %v907 = vmul.f32 %v475, %v905
        %v908 = vmul.f32 %v475, %v906
        %v909 = vadd.f32 %v900, %v907
        %v910 = vadd.f32 %v901, %v908
        %v912 = vsub.f32 %v437, %v485
        %v913 = vsub.f32 %v439, %v485
        %v914 = vmul.f32 %v912, %v912
        %v915 = vmul.f32 %v913, %v913
        %v916 = vmul.f32 %v497, %v914
        %v917 = vmul.f32 %v497, %v915
        %v918 = vadd.f32 %v909, %v916
        %v919 = vadd.f32 %v910, %v917
        %v921 = vsub.f32 %v441, %v507
        %v922 = vsub.f32 %v443, %v507
        %v923 = vmul.f32 %v921, %v921
        %v924 = vmul.f32 %v922, %v922
        %v925 = vmul.f32 %v519, %v923
        %v926 = vmul.f32 %v519, %v924
        %v927 = vadd.f32 %v918, %v925
        %v928 = vadd.f32 %v919, %v926
        %s929 = sadd.f32 %s894, %s416
        %v930 = vstv %s929
        %v931 = vadd.f32 %v927, %v930
        %v932 = vadd.f32 %v928, %v930
        %v933 = vmul.f32 %v931, 1.442695
        %v934 = vpow.pop %v933
        %v935 = vmul.f32 %v932, 1.442695
        %v936 = vpow.pop %v935
        %v939 = vrot.slane %v934, 7
        %v940 = vrot.slane %v936, 7
        %v941 = vsel %vm546, %v939, %v940
        %v943 = vsel %vm426, %v941, 0.0
        %v944 = vadd.f32 %v839, %v943
        %v948 = vmul.f32 %v943, %v579
        %v949 = vmul.f32 %v943, %v585
        %v950 = vmul.f32 %v943, %v591
        %v951 = vadd.f32 %v891, %v948
        %v952 = vadd.f32 %v892, %v949
        %v953 = vadd.f32 %v893, %v950
        %v955 = vsub.f32 %v718, %v733
        %v956 = vsub.f32 %v720, %v733
        %v957 = vmul.f32 %v955, %v955
        %v958 = vmul.f32 %v956, %v956
        %v959 = vmul.f32 %v457, %v957
        %v960 = vmul.f32 %v457, %v958
        %v962 = vsub.f32 %v722, %v749
        %v963 = vsub.f32 %v724, %v749
        %v964 = vmul.f32 %v962, %v962
        %v965 = vmul.f32 %v963, %v963
        %v966 = vmul.f32 %v475, %v964
        %v967 = vmul.f32 %v475, %v965
        %v968 = vadd.f32 %v959, %v966
        %v969 = vadd.f32 %v960, %v967
        %v971 = vsub.f32 %v726, %v769
        %v972 = vsub.f32 %v728, %v769
        %v973 = vmul.f32 %v971, %v971
        %v974 = vmul.f32 %v972, %v972
        %v975 = vmul.f32 %v497, %v973
        %v976 = vmul.f32 %v497, %v974
        %v977 = vadd.f32 %v968, %v975
        %v978 = vadd.f32 %v969, %v976
        %v980 = vsub.f32 %v730, %v789
        %v981 = vsub.f32 %v732, %v789
        %v982 = vmul.f32 %v980, %v980
        %v983 = vmul.f32 %v981, %v981
        %v984 = vmul.f32 %v519, %v982
        %v985 = vmul.f32 %v519, %v983
        %v986 = vadd.f32 %v977, %v984
        %v987 = vadd.f32 %v978, %v985
        %v988 = vadd.f32 %v986, %v930
        %v989 = vadd.f32 %v987, %v930
        %v990 = vmul.f32 %v988, 1.442695
        %v991 = vpow.pop %v990
        %v992 = vmul.f32 %v989, 1.442695
        %v993 = vpow.pop %v992
        %v996 = vrot.slane %v991, 1
        %v997 = vrot.slane %v993, 1
        %v998 = vsel %vm825, %v996, %v997
        %v1000 = vsel %vm715, %v998, 0.0
        %v1001 = vadd.f32 %v944, %v1000
        %v1005 = vmul.f32 %v1000, %v857
        %v1006 = vmul.f32 %v1000, %v863
        %v1007 = vmul.f32 %v1000, %v869
        %v1008 = vadd.f32 %v951, %v1005
        %v1009 = vadd.f32 %v952, %v1006
        %v1010 = vadd.f32 %v953, %v1007
        %vm1011 = vcmp.lt.s32.totalorder %v424, 127
        %vm1012 = vmand %vm426, %vm1011
        %v1013 = vld [vmem:[#allocation2 + $0x10] sm:$0x80]
        %v1014 = vld [vmem:[#allocation2 + $0x28] sm:$0x7f]
        %v1015 = vld [vmem:[#allocation2 + $0x58] sm:$0x80]
        %v1016 = vld [vmem:[#allocation2 + $0x70] sm:$0x7f]
        %v1017 = vld [vmem:[#allocation2 + $0xa0] sm:$0x80]
        %v1018 = vld [vmem:[#allocation2 + $0xb8] sm:$0x7f]
        %v1019 = vld [vmem:[#allocation2 + $0xe8] sm:$0x80]
        %v1020 = vld [vmem:[#allocation2 + $0x100] sm:$0x7f]
        %1021 = vrot.lane.b32.xlu0 %v445, 1
        %v1022 = vpop.permute.xlu0 %1021
        %v1024 = vsub.f32 %v429, %v1022
        %v1025 = vsub.f32 %v1013, %v1022
        %v1026 = vsub.f32 %v431, %v1022
        %v1027 = vsub.f32 %v1014, %v1022
        %v1028 = vmul.f32 %v1024, %v1024
        %v1029 = vmul.f32 %v1025, %v1025
        %v1030 = vmul.f32 %v1026, %v1026
        %v1031 = vmul.f32 %v1027, %v1027
        %v1032 = vmul.f32 %v457, %v1028
        %v1033 = vmul.f32 %v457, %v1029
        %v1034 = vmul.f32 %v457, %v1030
        %v1035 = vmul.f32 %v457, %v1031
        %1036 = vrot.lane.b32.xlu0 %v463, 1
        %v1037 = vpop.permute.xlu0 %1036
        %v1039 = vsub.f32 %v433, %v1037
        %v1040 = vsub.f32 %v1015, %v1037
        %v1041 = vsub.f32 %v435, %v1037
        %v1042 = vsub.f32 %v1016, %v1037
        %v1043 = vmul.f32 %v1039, %v1039
        %v1044 = vmul.f32 %v1040, %v1040
        %v1045 = vmul.f32 %v1041, %v1041
        %v1046 = vmul.f32 %v1042, %v1042
        %v1047 = vmul.f32 %v475, %v1043
        %v1048 = vmul.f32 %v475, %v1044
        %v1049 = vmul.f32 %v475, %v1045
        %v1050 = vmul.f32 %v475, %v1046
        %v1051 = vadd.f32 %v1032, %v1047
        %v1052 = vadd.f32 %v1033, %v1048
        %v1053 = vadd.f32 %v1034, %v1049
        %v1054 = vadd.f32 %v1035, %v1050
        %1055 = vrot.lane.b32.xlu0 %v485, 1
        %v1056 = vpop.permute.xlu0 %1055
        %v1058 = vsub.f32 %v437, %v1056
        %v1059 = vsub.f32 %v1017, %v1056
        %v1060 = vsub.f32 %v439, %v1056
        %v1061 = vsub.f32 %v1018, %v1056
        %v1062 = vmul.f32 %v1058, %v1058
        %v1063 = vmul.f32 %v1059, %v1059
        %v1064 = vmul.f32 %v1060, %v1060
        %v1065 = vmul.f32 %v1061, %v1061
        %v1066 = vmul.f32 %v497, %v1062
        %v1067 = vmul.f32 %v497, %v1063
        %v1068 = vmul.f32 %v497, %v1064
        %v1069 = vmul.f32 %v497, %v1065
        %v1070 = vadd.f32 %v1051, %v1066
        %v1071 = vadd.f32 %v1052, %v1067
        %v1072 = vadd.f32 %v1053, %v1068
        %v1073 = vadd.f32 %v1054, %v1069
        %1074 = vrot.lane.b32.xlu0 %v507, 1
        %v1075 = vpop.permute.xlu0 %1074
        %v1077 = vsub.f32 %v441, %v1075
        %v1078 = vsub.f32 %v1019, %v1075
        %v1079 = vsub.f32 %v443, %v1075
        %v1080 = vsub.f32 %v1020, %v1075
        %v1081 = vmul.f32 %v1077, %v1077
        %v1082 = vmul.f32 %v1078, %v1078
        %v1083 = vmul.f32 %v1079, %v1079
        %v1084 = vmul.f32 %v1080, %v1080
        %v1085 = vmul.f32 %v519, %v1081
        %v1086 = vmul.f32 %v519, %v1082
        %v1087 = vmul.f32 %v519, %v1083
        %v1088 = vmul.f32 %v519, %v1084
        %v1089 = vadd.f32 %v1070, %v1085
        %v1090 = vadd.f32 %v1071, %v1086
        %v1091 = vadd.f32 %v1072, %v1087
        %v1092 = vadd.f32 %v1073, %v1088
        %v1093 = vadd.f32 %v1089, %v529
        %v1094 = vadd.f32 %v1090, %v529
        %v1095 = vadd.f32 %v1091, %v529
        %v1096 = vadd.f32 %v1092, %v529
        %v1097 = vmul.f32 %v1093, 1.442695
        %v1098 = vpow.pop %v1097
        %v1099 = vmul.f32 %v1094, 1.442695
        %v1100 = vpow.pop %v1099
        %v1101 = vmul.f32 %v1095, 1.442695
        %v1102 = vpow.pop %v1101
        %v1103 = vmul.f32 %v1096, 1.442695
        %v1104 = vpow.pop %v1103
        %v1109 = vrot.slane %v1098, 7
        %v1110 = vrot.slane %v1102, 7
        %v1111 = vsel %vm546, %v1109, %v1110
        %v1112 = vrot.slane %v1100, 7
        %v1113 = vrot.slane %v1104, 7
        %v1114 = vsel %vm546, %v1112, %v1113
        %1115 = vrot.lane.b32.xlu0 %v1111, 127
        %v1116 = vpop.permute.xlu0 %1115
        %1117 = vrot.lane.b32.xlu0 %v1114, 127
        %v1118 = vpop.permute.xlu0 %1117
        %vm1119 = vcmask 1039360
        %v1120 = vsel %vm1119, %v1116, %v1118
        %v1122 = vsel %vm1012, %v1120, 0.0
        %v1123 = vadd.f32 %v1001, %v1122
        %v1130 = vrot.slane %v1013, 7
        %v1131 = vrot.slane %v1014, 7
        %v1132 = vsel %vm546, %v1130, %v1131
        %v1133 = vrot.slane %v1015, 7
        %v1134 = vrot.slane %v1016, 7
        %v1135 = vsel %vm546, %v1133, %v1134
        %v1136 = vrot.slane %v1017, 7
        %v1137 = vrot.slane %v1018, 7
        %v1138 = vsel %vm546, %v1136, %v1137
        %1139 = vrot.lane.b32.xlu0 %v579, 127
        %v1140 = vpop.permute.xlu0 %1139
        %1141 = vrot.lane.b32.xlu0 %v1132, 127
        %v1142 = vpop.permute.xlu0 %1141
        %1143 = vrot.lane.b32.xlu0 %v585, 127
        %v1144 = vpop.permute.xlu0 %1143
        %1145 = vrot.lane.b32.xlu0 %v1135, 127
        %v1146 = vpop.permute.xlu0 %1145
        %1147 = vrot.lane.b32.xlu0 %v591, 127
        %v1148 = vpop.permute.xlu0 %1147
        %1149 = vrot.lane.b32.xlu0 %v1138, 127
        %v1150 = vpop.permute.xlu0 %1149
        %v1151 = vsel %vm1119, %v1140, %v1142
        %v1152 = vsel %vm1119, %v1144, %v1146
        %v1153 = vsel %vm1119, %v1148, %v1150
        %v1157 = vmul.f32 %v1122, %v1151
        %v1158 = vmul.f32 %v1122, %v1152
        %v1159 = vmul.f32 %v1122, %v1153
        %v1160 = vadd.f32 %v1008, %v1157
        %v1161 = vadd.f32 %v1009, %v1158
        %v1162 = vadd.f32 %v1010, %v1159
        %v1163 = vld [vmem:[#allocation2 + $0x28] sm:$0xff]
        %v1164 = vld [vmem:[#allocation2 + $0x70] sm:$0xff]
        %v1165 = vld [vmem:[#allocation2 + $0xb8] sm:$0xff]
        %v1166 = vld [vmem:[#allocation2 + $0x100] sm:$0xff]
        %1167 = vrot.lane.b32.xlu0 %v352, 1
        %v1168 = vpop.permute.xlu0 %1167
        %v1170 = vsub.f32 %v617, %v1168
        %v1171 = vsub.f32 %v1163, %v1168
        %v1172 = vmul.f32 %v1170, %v1170
        %v1173 = vmul.f32 %v1171, %v1171
        %v1174 = vmul.f32 %v457, %v1172
        %v1175 = vmul.f32 %v457, %v1173
        %1176 = vrot.lane.b32.xlu0 %v353, 1
        %v1177 = vpop.permute.xlu0 %1176
        %v1179 = vsub.f32 %v619, %v1177
        %v1180 = vsub.f32 %v1164, %v1177
        %v1181 = vmul.f32 %v1179, %v1179
        %v1182 = vmul.f32 %v1180, %v1180
        %v1183 = vmul.f32 %v475, %v1181
        %v1184 = vmul.f32 %v475, %v1182
        %v1185 = vadd.f32 %v1174, %v1183
        %v1186 = vadd.f32 %v1175, %v1184
        %1187 = vrot.lane.b32.xlu0 %v354, 1
        %v1188 = vpop.permute.xlu0 %1187
        %v1190 = vsub.f32 %v621, %v1188
        %v1191 = vsub.f32 %v1165, %v1188
        %v1192 = vmul.f32 %v1190, %v1190
        %v1193 = vmul.f32 %v1191, %v1191
        %v1194 = vmul.f32 %v497, %v1192
        %v1195 = vmul.f32 %v497, %v1193
        %v1196 = vadd.f32 %v1185, %v1194
        %v1197 = vadd.f32 %v1186, %v1195
        %1198 = vrot.lane.b32.xlu0 %v355, 1
        %v1199 = vpop.permute.xlu0 %1198
        %v1201 = vsub.f32 %v623, %v1199
        %v1202 = vsub.f32 %v1166, %v1199
        %v1203 = vmul.f32 %v1201, %v1201
        %v1204 = vmul.f32 %v1202, %v1202
        %v1205 = vmul.f32 %v519, %v1203
        %v1206 = vmul.f32 %v519, %v1204
        %v1207 = vadd.f32 %v1196, %v1205
        %v1208 = vadd.f32 %v1197, %v1206
        %v1209 = vadd.f32 %v1207, %v668
        %v1210 = vadd.f32 %v1208, %v668
        %v1211 = vmul.f32 %v1209, 1.442695
        %v1212 = vpow.pop %v1211
        %v1213 = vmul.f32 %v1210, 1.442695
        %v1214 = vpow.pop %v1213
        %1217 = vrot.lane.b32.xlu0 %v1212, 127
        %v1218 = vpop.permute.xlu0 %1217
        %1219 = vrot.lane.b32.xlu0 %v1214, 127
        %v1220 = vpop.permute.xlu0 %1219
        %v1221 = vsel %vm1119, %v1218, %v1220
        %v1223 = vsel %vm1011, %v1221, 0.0
        %v1224 = vadd.f32 %v1123, %v1223
        %1228 = vrot.lane.b32.xlu0 %v617, 127
        %v1229 = vpop.permute.xlu0 %1228
        %1230 = vrot.lane.b32.xlu0 %v1163, 127
        %v1231 = vpop.permute.xlu0 %1230
        %1232 = vrot.lane.b32.xlu0 %v619, 127
        %v1233 = vpop.permute.xlu0 %1232
        %1234 = vrot.lane.b32.xlu0 %v1164, 127
        %v1235 = vpop.permute.xlu0 %1234
        %1236 = vrot.lane.b32.xlu0 %v621, 127
        %v1237 = vpop.permute.xlu0 %1236
        %1238 = vrot.lane.b32.xlu0 %v1165, 127
        %v1239 = vpop.permute.xlu0 %1238
        %v1240 = vsel %vm1119, %v1229, %v1231
        %v1241 = vsel %vm1119, %v1233, %v1235
        %v1242 = vsel %vm1119, %v1237, %v1239
        %v1246 = vmul.f32 %v1223, %v1240
        %v1247 = vmul.f32 %v1223, %v1241
        %v1248 = vmul.f32 %v1223, %v1242
        %v1249 = vadd.f32 %v1160, %v1246
        %v1250 = vadd.f32 %v1161, %v1247
        %v1251 = vadd.f32 %v1162, %v1248
        %vm1252 = vmand %vm715, %vm1011
        %v1253 = vld [vmem:[#allocation2 + $0x20] sm:$0xfe]
        %v1254 = vld [vmem:[#allocation2 + $0x28] sm:$0xfe]
        %v1255 = vld [vmem:[#allocation2 + $0x38] sm:$0x1]
        %v1256 = vld [vmem:[#allocation2 + $0x40] sm:$0x1]
        %v1257 = vld [vmem:[#allocation2 + $0x68] sm:$0xfe]
        %v1258 = vld [vmem:[#allocation2 + $0x70] sm:$0xfe]
        %v1259 = vld [vmem:[#allocation2 + $0x80] sm:$0x1]
        %v1260 = vld [vmem:[#allocation2 + $0x88] sm:$0x1]
        %v1261 = vld [vmem:[#allocation2 + $0xb0] sm:$0xfe]
        %v1262 = vld [vmem:[#allocation2 + $0xb8] sm:$0xfe]
        %v1263 = vld [vmem:[#allocation2 + $0xc8] sm:$0x1]
        %v1264 = vld [vmem:[#allocation2 + $0xd0] sm:$0x1]
        %v1265 = vld [vmem:[#allocation2 + $0xf8] sm:$0xfe]
        %v1266 = vld [vmem:[#allocation2 + $0x100] sm:$0xfe]
        %v1267 = vld [vmem:[#allocation2 + $0x110] sm:$0x1]
        %v1268 = vld [vmem:[#allocation2 + $0x118] sm:$0x1]
        %1269 = vrot.lane.b32.xlu0 %v733, 1
        %v1270 = vpop.permute.xlu0 %1269
        %v1272 = vsub.f32 %v1253, %v1270
        %v1273 = vsub.f32 %v1254, %v1270
        %v1274 = vsub.f32 %v1255, %v1270
        %v1275 = vsub.f32 %v1256, %v1270
        %v1276 = vmul.f32 %v1272, %v1272
        %v1277 = vmul.f32 %v1273, %v1273
        %v1278 = vmul.f32 %v1274, %v1274
        %v1279 = vmul.f32 %v1275, %v1275
        %v1280 = vmul.f32 %v457, %v1276
        %v1281 = vmul.f32 %v457, %v1277
        %v1282 = vmul.f32 %v457, %v1278
        %v1283 = vmul.f32 %v457, %v1279
        %1284 = vrot.lane.b32.xlu0 %v749, 1
        %v1285 = vpop.permute.xlu0 %1284
        %v1287 = vsub.f32 %v1257, %v1285
        %v1288 = vsub.f32 %v1258, %v1285
        %v1289 = vsub.f32 %v1259, %v1285
        %v1290 = vsub.f32 %v1260, %v1285
        %v1291 = vmul.f32 %v1287, %v1287
        %v1292 = vmul.f32 %v1288, %v1288
        %v1293 = vmul.f32 %v1289, %v1289
        %v1294 = vmul.f32 %v1290, %v1290
        %v1295 = vmul.f32 %v475, %v1291
        %v1296 = vmul.f32 %v475, %v1292
        %v1297 = vmul.f32 %v475, %v1293
        %v1298 = vmul.f32 %v475, %v1294
        %v1299 = vadd.f32 %v1280, %v1295
        %v1300 = vadd.f32 %v1281, %v1296
        %v1301 = vadd.f32 %v1282, %v1297
        %v1302 = vadd.f32 %v1283, %v1298
        %1303 = vrot.lane.b32.xlu0 %v769, 1
        %v1304 = vpop.permute.xlu0 %1303
        %v1306 = vsub.f32 %v1261, %v1304
        %v1307 = vsub.f32 %v1262, %v1304
        %v1308 = vsub.f32 %v1263, %v1304
        %v1309 = vsub.f32 %v1264, %v1304
        %v1310 = vmul.f32 %v1306, %v1306
        %v1311 = vmul.f32 %v1307, %v1307
        %v1312 = vmul.f32 %v1308, %v1308
        %v1313 = vmul.f32 %v1309, %v1309
        %v1314 = vmul.f32 %v497, %v1310
        %v1315 = vmul.f32 %v497, %v1311
        %v1316 = vmul.f32 %v497, %v1312
        %v1317 = vmul.f32 %v497, %v1313
        %v1318 = vadd.f32 %v1299, %v1314
        %v1319 = vadd.f32 %v1300, %v1315
        %v1320 = vadd.f32 %v1301, %v1316
        %v1321 = vadd.f32 %v1302, %v1317
        %1322 = vrot.lane.b32.xlu0 %v789, 1
        %v1323 = vpop.permute.xlu0 %1322
        %v1325 = vsub.f32 %v1265, %v1323
        %v1326 = vsub.f32 %v1266, %v1323
        %v1327 = vsub.f32 %v1267, %v1323
        %v1328 = vsub.f32 %v1268, %v1323
        %v1329 = vmul.f32 %v1325, %v1325
        %v1330 = vmul.f32 %v1326, %v1326
        %v1331 = vmul.f32 %v1327, %v1327
        %v1332 = vmul.f32 %v1328, %v1328
        %v1333 = vmul.f32 %v519, %v1329
        %v1334 = vmul.f32 %v519, %v1330
        %v1335 = vmul.f32 %v519, %v1331
        %v1336 = vmul.f32 %v519, %v1332
        %v1337 = vadd.f32 %v1318, %v1333
        %v1338 = vadd.f32 %v1319, %v1334
        %v1339 = vadd.f32 %v1320, %v1335
        %v1340 = vadd.f32 %v1321, %v1336
        %v1341 = vadd.f32 %v1337, %v529
        %v1342 = vadd.f32 %v1338, %v529
        %v1343 = vadd.f32 %v1339, %v529
        %v1344 = vadd.f32 %v1340, %v529
        %v1345 = vmul.f32 %v1341, 1.442695
        %v1346 = vpow.pop %v1345
        %v1347 = vmul.f32 %v1342, 1.442695
        %v1348 = vpow.pop %v1347
        %v1349 = vmul.f32 %v1343, 1.442695
        %v1350 = vpow.pop %v1349
        %v1351 = vmul.f32 %v1344, 1.442695
        %v1352 = vpow.pop %v1351
        %v1357 = vrot.slane %v1346, 1
        %v1358 = vrot.slane %v1350, 1
        %v1359 = vsel %vm825, %v1357, %v1358
        %v1360 = vrot.slane %v1348, 1
        %v1361 = vrot.slane %v1352, 1
        %v1362 = vsel %vm825, %v1360, %v1361
        %1363 = vrot.lane.b32.xlu0 %v1359, 127
        %v1364 = vpop.permute.xlu0 %1363
        %1365 = vrot.lane.b32.xlu0 %v1362, 127
        %v1366 = vpop.permute.xlu0 %1365
        %v1367 = vsel %vm1119, %v1364, %v1366
        %v1369 = vsel %vm1252, %v1367, 0.0
        %v1370 = vadd.f32 %v1224, %v1369
        %v1383 = vrot.slane %v1253, 1
        %v1384 = vrot.slane %v1255, 1
        %v1385 = vsel %vm825, %v1383, %v1384
        %v1386 = vrot.slane %v1254, 1
        %v1387 = vrot.slane %v1256, 1
        %v1388 = vsel %vm825, %v1386, %v1387
        %v1389 = vrot.slane %v1257, 1
        %v1390 = vrot.slane %v1259, 1
        %v1391 = vsel %vm825, %v1389, %v1390
        %v1392 = vrot.slane %v1258, 1
        %v1393 = vrot.slane %v1260, 1
        %v1394 = vsel %vm825, %v1392, %v1393
        %v1395 = vrot.slane %v1261, 1
        %v1396 = vrot.slane %v1263, 1
        %v1397 = vsel %vm825, %v1395, %v1396
        %v1398 = vrot.slane %v1262, 1
        %v1399 = vrot.slane %v1264, 1
        %v1400 = vsel %vm825, %v1398, %v1399
        %1401 = vrot.lane.b32.xlu0 %v1385, 127
        %v1402 = vpop.permute.xlu0 %1401
        %1403 = vrot.lane.b32.xlu0 %v1388, 127
        %v1404 = vpop.permute.xlu0 %1403
        %1405 = vrot.lane.b32.xlu0 %v1391, 127
        %v1406 = vpop.permute.xlu0 %1405
        %1407 = vrot.lane.b32.xlu0 %v1394, 127
        %v1408 = vpop.permute.xlu0 %1407
        %1409 = vrot.lane.b32.xlu0 %v1397, 127
        %v1410 = vpop.permute.xlu0 %1409
        %1411 = vrot.lane.b32.xlu0 %v1400, 127
        %v1412 = vpop.permute.xlu0 %1411
        %v1413 = vsel %vm1119, %v1402, %v1404
        %v1414 = vsel %vm1119, %v1406, %v1408
        %v1415 = vsel %vm1119, %v1410, %v1412
        %v1419 = vmul.f32 %v1369, %v1413
        %v1420 = vmul.f32 %v1369, %v1414
        %v1421 = vmul.f32 %v1369, %v1415
        %v1422 = vadd.f32 %v1249, %v1419
        %v1423 = vadd.f32 %v1250, %v1420
        %v1424 = vadd.f32 %v1251, %v1421
        %v1425 = vrcp.pop %v1370
        %v1426 = vmul.f32 %v1422, %v1425
        %v1427 = vmul.f32 %v1423, %v1425
        %v1428 = vmul.f32 %v1424, %v1425
        %1429 = vst [vmem:[%s345] sm:$0xff] %v1426
        %1430 = vst [vmem:[%s345 + $0x8] sm:$0xff] %v1427
        %1431 = vst [vmem:[%s345 + $0x10] sm:$0xff] %v1428
        %s1432 = sand.u32 %s164, 1
        %s1433 = scalar_lea.sflag [#allocation5], %s1432
        %s1434 = sand.u32 %s164, 1
        %s1435 = smul.addr %s1434, 24
        %s1436 = scalar_lea.vmem [#allocation11], %s1435
        // Predicated region
        $region53: #{tpu_custom_call.1} parent=35 // pred_check
          %p1437 = pneg %p174
        $region54: #{tpu_custom_call.1} parent=35 // pred_check_branch
          %1439 = sbr.rel (%p1437) target = $region56
        $region55: #{tpu_custom_call.1} parent=35 // pred_region
          %s1441 = ssub.s32 384, 384
          %1442 = vsyncadd %s1433, %s1441
          %s1443 = smul.addr %s29, 6
          %s1444 = sadd.s32 %s30, %s1443
          %s1445 = smul.addr %s1444, 128
          %s1446 = scalar_lea.hbm %s4, %s1445
          %s1447 = sshll.u32 %s1436, 4
          %s1448 = int_to_ptr.vmem [resolvable:$true] %s1447
          %1453 = dma.vmem_to_hbm [thread:$0]  %s1448, 384, %s1446, %s1433, 128, 256, 8
        $region56: #{tpu_custom_call.1} parent=35 // pred_fallthru
          _
      $region36: #{tpu_custom_call.1} parent=5 // pred_fallthru
        _
      %p1454 = scmp.le.s32.totalorder 2, %s20
      // Predicated region
      $region57: #{tpu_custom_call.1} parent=5 // pred_check
        %p1455 = pneg %p1454
      $region58: #{tpu_custom_call.1} parent=5 // pred_check_branch
        %1457 = sbr.rel (%p1455) target = $region60
      $region59: #{tpu_custom_call.1} parent=5 // pred_region
        %s1458 = ssub.s32 %s20, 2
        // Predicated region
        $region61: #{tpu_custom_call.1} parent=59 // pred_check
          %p1459 = pneg %p180
        $region62: #{tpu_custom_call.1} parent=59 // pred_check_branch
          %1461 = sbr.rel (%p1459) target = $region64
        $region63: #{tpu_custom_call.1} parent=59 // pred_region
          %s1462 = sand.u32 %s165, 1
          %s1463 = scalar_lea.sflag [#allocation5], %s1462
          %s1464 = sand.u32 %s165, 1
          %s1465 = smul.addr %s1464, 24
          %s1466 = scalar_lea.vmem [#allocation11], %s1465
          %1467 = dma.done %s1463, 384
        $region64: #{tpu_custom_call.1} parent=59 // pred_fallthru
          _
      $region60: #{tpu_custom_call.1} parent=5 // pred_fallthru
        _
    $region6: #{tpu_custom_call.1} parent=1 // loop_footer
      %s24 = sadd.s32 1, %s20
    $region7: #{tpu_custom_call.1} parent=1 // loop_footer_branch
      %19 = sbr.rel target = $region3
    $region8: #{tpu_custom_call.1} parent=1 // loop_exit
      _
    %1468 = vsyncpa [#allocation4], 1
    %s1469 = scalar_lea.sflag [#allocation4], 1
    %1470 = vsyncpa %s1469, 1
    %1471 = vsyncpa [#allocation9], 1
    %s1472 = scalar_lea.sflag [#allocation9], 1
    %1473 = vsyncpa %s1472, 1
    %1474 = vsyncpa [#allocation5], 1
    %s1475 = scalar_lea.sflag [#allocation5], 1
    %1476 = vsyncpa %s1475, 1
    %1477 = vsyncpa [#allocation6], 1
    %s1478 = scalar_lea.sflag [#allocation6], 1
    %1479 = vsyncpa %s1478, 1

</llo_original>
